<compile_context>
chip_gen: v5e
topology: v5e:2x2
jax: 0.10.0
libtpu: 0.0.40
codegen_flags: <defaults>
</compile_context>

<pallas_src>
import functools

import jax
import jax.numpy as jnp
from jax.experimental import pallas as pl
from jax.experimental.pallas import tpu as pltpu


def _fused_mlp_kernel(x_ref, w1_ref, b1_ref, w2_ref, b2_ref, w3_ref, b3_ref, o_ref):
    """out = relu(relu(x@w1+b1) @ w2 + b2) @ w3 + b3 for one (TM, .) batch tile.

    Weights are bf16, biases f32, accumulation f32 on the MXU.
    """
    x = x_ref[...].astype(jnp.bfloat16)

    h1 = jnp.dot(x, w1_ref[...], preferred_element_type=jnp.float32) + b1_ref[...]
    h1 = jnp.maximum(h1, 0.0)  # f32 elementwise (v5e-friendly)

    h2 = jnp.dot(h1.astype(jnp.bfloat16), w2_ref[...],
                 preferred_element_type=jnp.float32) + b2_ref[...]
    h2 = jnp.maximum(h2, 0.0)

    h3 = jnp.dot(h2.astype(jnp.bfloat16), w3_ref[...],
                 preferred_element_type=jnp.float32) + b3_ref[...]
    o_ref[...] = h3.astype(o_ref.dtype)


def fused_mlp(x, w1, b1, w2, b2, w3p, b3p, *, tm):
    """Batched fused MLP. x: (M_pad, in_n) f32 with M_pad a multiple of tm."""
    m_pad, in_n = x.shape
    h1n = w1.shape[1]
    h2n = w2.shape[1]
    n_pad = w3p.shape[1]
    grid = (m_pad // tm,)

    flops = 2 * m_pad * (in_n * h1n + h1n * h2n + h2n * n_pad)
    bytes_accessed = (
        x.size * x.dtype.itemsize
        + (w1.size + w2.size + w3p.size) * 2          # bf16 weights
        + (b1.size + b2.size + b3p.size) * 4          # f32 biases
        + m_pad * n_pad * 4                           # f32 output
    )

    return pl.pallas_call(
        _fused_mlp_kernel,
        out_shape=jax.ShapeDtypeStruct((m_pad, n_pad), jnp.float32),
        grid=grid,
        in_specs=[
            # batch-tiled activations
            pl.BlockSpec((tm, in_n), lambda i: (i, 0)),
            # weights / biases: whole-array VMEM blocks, resident across grid steps
            pl.BlockSpec((in_n, h1n), lambda i: (0, 0)),
            pl.BlockSpec((1, h1n), lambda i: (0, 0)),
            pl.BlockSpec((h1n, h2n), lambda i: (0, 0)),
            pl.BlockSpec((1, h2n), lambda i: (0, 0)),
            pl.BlockSpec((h2n, n_pad), lambda i: (0, 0)),
            pl.BlockSpec((1, n_pad), lambda i: (0, 0)),
        ],
        out_specs=pl.BlockSpec((tm, n_pad), lambda i: (i, 0)),
        compiler_params=pltpu.CompilerParams(
            dimension_semantics=("parallel",),  # shards M across v7x's 2 TCs
        ),
        cost_estimate=pl.CostEstimate(
            flops=flops, transcendentals=0, bytes_accessed=bytes_accessed),
    )(x, w1, b1, w2, b2, w3p, b3p)


def init_params(key, in_n, out_n):
    """Deterministic init mimicking nn.Linear (weights kept as [in, out]).

    Weights are cast to bf16 once here; biases stay f32. w3/b3 are zero-padded to
    a 128-lane multiple once, so the forward pass never re-pads per call.
    """
    ks = jax.random.split(key, 6)

    def linear_init(kw, kb, fan_in, fan_out):
        bound = 1.0 / jnp.sqrt(jnp.float32(fan_in))
        w = jax.random.uniform(kw, (fan_in, fan_out), jnp.float32, -bound, bound)
        b = jax.random.uniform(kb, (1, fan_out), jnp.float32, -bound, bound)
        return w, b

    w1, b1 = linear_init(ks[0], ks[1], in_n, 1024)
    w2, b2 = linear_init(ks[2], ks[3], 1024, 512)
    w3, b3 = linear_init(ks[4], ks[5], 512, out_n)

    n_pad = -(-out_n // 128) * 128  # round up to lane multiple
    w3p = jnp.zeros((512, n_pad), jnp.float32).at[:, :out_n].set(w3)
    b3p = jnp.zeros((1, n_pad), jnp.float32).at[:, :out_n].set(b3)

    return dict(
        w1=w1.astype(jnp.bfloat16), b1=b1,
        w2=w2.astype(jnp.bfloat16), b2=b2,
        w3p=w3p.astype(jnp.bfloat16), b3p=b3p,
    )


@functools.partial(jax.jit, static_argnames=("out_n",))
def model_forward(x, w1, b1, w2, b2, w3p, b3p, out_n):
    """Forward pass matching the PyTorch module (Dropout(p=0) is the identity)."""
    m = x.shape[0]
    # Pad batch to a sublane multiple (8); tile at TM<=128 rows per grid step.
    m8 = -(-m // 8) * 8
    tm = 128 if m8 >= 128 else m8
    m_pad = -(-m8 // tm) * tm
    if m_pad != m:
        x = jnp.zeros((m_pad, x.shape[1]), x.dtype).at[:m].set(x)

    out = fused_mlp(x, w1, b1, w2, b2, w3p, b3p, tm=tm)
    # Padded rows/cols are discarded; padded output cols are exact zeros, so
    # downstream code could instead consume the padded slab to skip this slice.
    return out[:m, :out_n]


if __name__ == "__main__":
    key = jax.random.PRNGKey(0)
    in_n, out_n, batch = 32, 100, 8

    k_param, k_x = jax.random.split(key)
    p = init_params(k_param, in_n, out_n)
    x = jax.random.normal(k_x, (batch, in_n), jnp.float32)

    out = model_forward(x, p["w1"], p["b1"], p["w2"], p["b2"],
                        p["w3p"], p["b3p"], out_n)
    out = jax.block_until_ready(out)

    # Reference in plain JAX using the SAME bf16 weights and f32 accumulation, so
    # the only expected difference vs. the kernel is reduction order.
    def ref_fwd(xr):
        h = jnp.dot(xr.astype(jnp.bfloat16), p["w1"],
                    preferred_element_type=jnp.float32) + p["b1"]
        h = jnp.maximum(h, 0.0)
        h = jnp.dot(h.astype(jnp.bfloat16), p["w2"],
                    preferred_element_type=jnp.float32) + p["b2"]
        h = jnp.maximum(h, 0.0)
        h = jnp.dot(h.astype(jnp.bfloat16), p["w3p"],
                    preferred_element_type=jnp.float32) + p["b3p"]
        return h[:, :out_n]

    ref = ref_fwd(x)

    assert out.shape == (batch, out_n)
    assert jnp.allclose(out, ref, atol=2e-2, rtol=2e-2), \
        float(jnp.max(jnp.abs(out - ref)))

    print("KERNEL_OK")
</pallas_src>

<mosaic_0001>
module attributes {stable_mosaic.version = 11 : i64} {
  func.func @_fused_mlp_kernel(%arg0: i32, %arg1: memref<8x32xf32, #tpu.memory_space<vmem>>, %arg2: memref<32x1024xbf16, #tpu.memory_space<vmem>>, %arg3: memref<1x1024xf32, #tpu.memory_space<vmem>>, %arg4: memref<1024x512xbf16, #tpu.memory_space<vmem>>, %arg5: memref<1x512xf32, #tpu.memory_space<vmem>>, %arg6: memref<512x128xbf16, #tpu.memory_space<vmem>>, %arg7: memref<1x128xf32, #tpu.memory_space<vmem>>, %arg8: memref<8x128xf32, #tpu.memory_space<vmem>>) attributes {dimension_semantics = [#tpu.dimension_semantics<parallel>], iteration_bounds = array<i64: 1>, scalar_prefetch = 0 : i64, scratch_operands = 0 : i64, tpu.core_type = #tpu.core_type<tc>, window_params = [{transform_indices = @transform_0, window_bounds = array<i64: 8, 32>}, {pipeline_mode = #tpu.pipeline_mode<synchronous>, transform_indices = @transform_1, window_bounds = array<i64: 32, 1024>}, {pipeline_mode = #tpu.pipeline_mode<synchronous>, transform_indices = @transform_2, window_bounds = array<i64: 1, 1024>}, {pipeline_mode = #tpu.pipeline_mode<synchronous>, transform_indices = @transform_3, window_bounds = array<i64: 1024, 512>}, {pipeline_mode = #tpu.pipeline_mode<synchronous>, transform_indices = @transform_4, window_bounds = array<i64: 1, 512>}, {pipeline_mode = #tpu.pipeline_mode<synchronous>, transform_indices = @transform_5, window_bounds = array<i64: 512, 128>}, {pipeline_mode = #tpu.pipeline_mode<synchronous>, transform_indices = @transform_6, window_bounds = array<i64: 1, 128>}, {transform_indices = @transform_7, window_bounds = array<i64: 8, 128>}]} {
    %c0 = arith.constant 0 : index
    %c0_0 = arith.constant 0 : index
    %0 = vector.load %arg1[%c0, %c0_0] : memref<8x32xf32, #tpu.memory_space<vmem>>, vector<8x32xf32>
    %1 = arith.truncf %0 : vector<8x32xf32> to vector<8x32xbf16>
    %c0_1 = arith.constant 0 : index
    %c0_2 = arith.constant 0 : index
    %2 = vector.load %arg2[%c0_1, %c0_2] : memref<32x1024xbf16, #tpu.memory_space<vmem>>, vector<32x1024xbf16>
    %cst = arith.constant dense<0.000000e+00> : vector<8x1024xf32>
    %3 = tpu.matmul %1, %2, %cst {dimension_numbers = #tpu.dot_dimension_numbers<[1], [0], [0], [1], [0, 0, 1, 1], [], []>} : vector<8x32xbf16>, vector<32x1024xbf16>, vector<8x1024xf32> -> vector<8x1024xf32>
    %c0_3 = arith.constant 0 : index
    %c0_4 = arith.constant 0 : index
    %4 = vector.load %arg3[%c0_3, %c0_4] : memref<1x1024xf32, #tpu.memory_space<vmem>>, vector<1x1024xf32>
    %5 = vector.broadcast %4 : vector<1x1024xf32> to vector<8x1024xf32>
    %6 = arith.addf %3, %5 : vector<8x1024xf32>
    %cst_5 = arith.constant 0.000000e+00 : f32
    %7 = vector.broadcast %cst_5 : f32 to vector<8x1024xf32>
    %8 = arith.maximumf %6, %7 : vector<8x1024xf32>
    %9 = arith.truncf %8 : vector<8x1024xf32> to vector<8x1024xbf16>
    %c0_6 = arith.constant 0 : index
    %c0_7 = arith.constant 0 : index
    %10 = vector.load %arg4[%c0_6, %c0_7] : memref<1024x512xbf16, #tpu.memory_space<vmem>>, vector<1024x512xbf16>
    %cst_8 = arith.constant dense<0.000000e+00> : vector<8x512xf32>
    %11 = tpu.matmul %9, %10, %cst_8 {dimension_numbers = #tpu.dot_dimension_numbers<[1], [0], [0], [1], [0, 0, 1, 1], [], []>} : vector<8x1024xbf16>, vector<1024x512xbf16>, vector<8x512xf32> -> vector<8x512xf32>
    %c0_9 = arith.constant 0 : index
    %c0_10 = arith.constant 0 : index
    %12 = vector.load %arg5[%c0_9, %c0_10] : memref<1x512xf32, #tpu.memory_space<vmem>>, vector<1x512xf32>
    %13 = vector.broadcast %12 : vector<1x512xf32> to vector<8x512xf32>
    %14 = arith.addf %11, %13 : vector<8x512xf32>
    %cst_11 = arith.constant 0.000000e+00 : f32
    %15 = vector.broadcast %cst_11 : f32 to vector<8x512xf32>
    %16 = arith.maximumf %14, %15 : vector<8x512xf32>
    %17 = arith.truncf %16 : vector<8x512xf32> to vector<8x512xbf16>
    %c0_12 = arith.constant 0 : index
    %c0_13 = arith.constant 0 : index
    %18 = vector.load %arg6[%c0_12, %c0_13] : memref<512x128xbf16, #tpu.memory_space<vmem>>, vector<512x128xbf16>
    %cst_14 = arith.constant dense<0.000000e+00> : vector<8x128xf32>
    %19 = tpu.matmul %17, %18, %cst_14 {dimension_numbers = #tpu.dot_dimension_numbers<[1], [0], [0], [1], [0, 0, 1, 1], [], []>} : vector<8x512xbf16>, vector<512x128xbf16>, vector<8x128xf32> -> vector<8x128xf32>
    %c0_15 = arith.constant 0 : index
    %c0_16 = arith.constant 0 : index
    %20 = vector.load %arg7[%c0_15, %c0_16] : memref<1x128xf32, #tpu.memory_space<vmem>>, vector<1x128xf32>
    %21 = vector.broadcast %20 : vector<1x128xf32> to vector<8x128xf32>
    %22 = arith.addf %19, %21 : vector<8x128xf32>
    %c0_17 = arith.constant 0 : index
    %c0_18 = arith.constant 0 : index
    %23 = vector.load %arg8[%c0_17, %c0_18] : memref<8x128xf32, #tpu.memory_space<vmem>>, vector<8x128xf32>
    tpu.vector_store %arg8[%c0_17, %c0_18], %22 {strides = array<i32>} : memref<8x128xf32, #tpu.memory_space<vmem>>, vector<8x128xf32>,
    return
  }
  func.func @transform_0(%arg0: i32) -> (i32, i32) {
    %c0_i32 = arith.constant 0 : i32
    %c0_i32_0 = arith.constant 0 : i32
    return %arg0, %c0_i32 : i32, i32
  }
  func.func @transform_1(%arg0: i32) -> (i32, i32) {
    %c0_i32 = arith.constant 0 : i32
    %c0_i32_0 = arith.constant 0 : i32
    %c0_i32_1 = arith.constant 0 : i32
    return %c0_i32, %c0_i32_0 : i32, i32
  }
  func.func @transform_2(%arg0: i32) -> (i32, i32) {
    %c0_i32 = arith.constant 0 : i32
    %c0_i32_0 = arith.constant 0 : i32
    %c0_i32_1 = arith.constant 0 : i32
    return %c0_i32, %c0_i32_0 : i32, i32
  }
  func.func @transform_3(%arg0: i32) -> (i32, i32) {
    %c0_i32 = arith.constant 0 : i32
    %c0_i32_0 = arith.constant 0 : i32
    %c0_i32_1 = arith.constant 0 : i32
    return %c0_i32, %c0_i32_0 : i32, i32
  }
  func.func @transform_4(%arg0: i32) -> (i32, i32) {
    %c0_i32 = arith.constant 0 : i32
    %c0_i32_0 = arith.constant 0 : i32
    %c0_i32_1 = arith.constant 0 : i32
    return %c0_i32, %c0_i32_0 : i32, i32
  }
  func.func @transform_5(%arg0: i32) -> (i32, i32) {
    %c0_i32 = arith.constant 0 : i32
    %c0_i32_0 = arith.constant 0 : i32
    %c0_i32_1 = arith.constant 0 : i32
    return %c0_i32, %c0_i32_0 : i32, i32
  }
  func.func @transform_6(%arg0: i32) -> (i32, i32) {
    %c0_i32 = arith.constant 0 : i32
    %c0_i32_0 = arith.constant 0 : i32
    %c0_i32_1 = arith.constant 0 : i32
    return %c0_i32, %c0_i32_0 : i32, i32
  }
  func.func @transform_7(%arg0: i32) -> (i32, i32) {
    %c0_i32 = arith.constant 0 : i32
    %c0_i32_0 = arith.constant 0 : i32
    return %arg0, %c0_i32 : i32, i32
  }
}

</mosaic_0001>

<llo_original>
// kernel: model_forward.1
$region0: #{model_forward.1}
  #allocation0 [shape = 'u32[]', space=smem, size = 0x4, offset = 0x4, fixed_abs, tag = 'smem constant byte address 0x4 - core index']
  #allocation1 [shape = 'u32[72,128]{1,0:T(1,128)}', space=vmem, size = 0x9000, scoped, tag = 'internal scratch']
  %s0 = inlined_call_operand.hbm [shape: f32[8,32], index: 0, kind: input, shape index: {}]
  %s1 = inlined_call_operand.hbm [shape: bf16[32,1024], index: 1, kind: input, shape index: {}]
  %s2 = inlined_call_operand.hbm [shape: f32[1,1024], index: 2, kind: input, shape index: {}]
  %s3 = inlined_call_operand.hbm [shape: bf16[1024,512], index: 3, kind: input, shape index: {}]
  %s4 = inlined_call_operand.hbm [shape: f32[1,512], index: 4, kind: input, shape index: {}]
  %s5 = inlined_call_operand.hbm [shape: bf16[512,128], index: 5, kind: input, shape index: {}]
  %s6 = inlined_call_operand.vmem [shape: f32[1,128], index: 6, kind: input, shape index: {}]
  %s7 = inlined_call_operand.hbm [shape: f32[8,128], index: 7, kind: output, shape index: {}]
  %s8 = sld [smem:[#allocation0]]
  $region62: #{model_forward.1} parent=0
    _
  %s10 = ssub.s32 1, %s8
  %s11 = scalar_select 0, %s10, %s8
  $region1: #{model_forward.1} parent=0
    #allocation2 [shape = 'u8[4096]{0}', space=vmem, size = 0x1000, scoped, tag = 'input window, operand 0, single buffered']
    #allocation3 [shape = 's32[1]{0}', space=sflag, size = 0x4, scoped, tag = 'scoped memory for model_forward.1']
    #allocation4 [shape = 's32[1]{0}', space=sflag, size = 0x4, scoped, tag = 'scoped memory for model_forward.1']
    #allocation5 [shape = 'u8[65536]{0}', space=vmem, size = 0x10000, scoped, tag = 'input window, operand 1, single buffered']
    #allocation6 [shape = 's32[1]{0}', space=sflag, size = 0x4, scoped, tag = 'scoped memory for model_forward.1']
    #allocation7 [shape = 'u8[4096]{0}', space=vmem, size = 0x1000, scoped, tag = 'input window, operand 2, single buffered']
    #allocation8 [shape = 'u8[1048576]{0}', space=vmem, size = 0x100000, scoped, tag = 'input window, operand 3, single buffered']
    #allocation9 [shape = 's32[1]{0}', space=sflag, size = 0x4, scoped, tag = 'scoped memory for model_forward.1']
    #allocation10 [shape = 'u8[2048]{0}', space=vmem, size = 0x800, scoped, tag = 'input window, operand 4, single buffered']
    #allocation11 [shape = 'u8[131072]{0}', space=vmem, size = 0x20000, scoped, tag = 'input window, operand 5, single buffered']
    #allocation12 [shape = 's32[1]{0}', space=sflag, size = 0x4, scoped, tag = 'scoped memory for model_forward.1']
    #allocation13 [shape = 'u8[4096]{0}', space=vmem, size = 0x1000, scoped, tag = 'output window, operand 0, single buffered']
    %12 = vsyncpa [#allocation3], 0
    %13 = vsyncpa [#allocation6], 0
    %14 = vsyncpa [#allocation9], 0
    %15 = vsyncpa [#allocation12], 0
    %16 = vsyncpa [#allocation4], 0
    // Predicated region
    $region2: #{model_forward.1} parent=1 // pred_check
      _
    $region3: #{model_forward.1} parent=1 // pred_check_branch
      %18 = sbr.rel (0) target = $region5
    $region4: #{model_forward.1} parent=1 // pred_region
      %20 = vsyncadd [#allocation3], 0
      %s22 = sshll.u32 %s0, 4
      %s23 = int_to_ptr.hbm [resolvable:$true] %s22
      %s24 = sshll.u32 [#allocation2], 4
      %s25 = int_to_ptr.vmem [resolvable:$true] %s24
      %27 = dma.hbm_to_vmem [thread:$0]  %s23, 128, %s25, [#allocation3]
    $region5: #{model_forward.1} parent=1 // pred_fallthru
      _
    // Predicated region
    $region6: #{model_forward.1} parent=1 // pred_check
      _
    $region7: #{model_forward.1} parent=1 // pred_check_branch
      %29 = sbr.rel (0) target = $region9
    $region8: #{model_forward.1} parent=1 // pred_region
      %31 = vsyncadd [#allocation6], 0
      %s32 = sshll.u32 %s1, 4
      %s33 = int_to_ptr.hbm [resolvable:$true] %s32
      %s34 = sshll.u32 [#allocation5], 4
      %s35 = int_to_ptr.vmem [resolvable:$true] %s34
      %40 = dma.hbm_to_vmem [thread:$0]  %s33, 2048, %s35, [#allocation6], 512, 512, 32
    $region9: #{model_forward.1} parent=1 // pred_fallthru
      _
    // Predicated region
    $region10: #{model_forward.1} parent=1 // pred_check
      _
    $region11: #{model_forward.1} parent=1 // pred_check_branch
      %42 = sbr.rel (0) target = $region13
    $region12: #{model_forward.1} parent=1 // pred_region
      %44 = vsyncadd [#allocation6], 0
      %s46 = sshll.u32 %s2, 4
      %s47 = int_to_ptr.hbm [resolvable:$true] %s46
      %s48 = sshll.u32 [#allocation7], 4
      %s49 = int_to_ptr.vmem [resolvable:$true] %s48
      %51 = dma.hbm_to_vmem [thread:$0]  %s47, 128, %s49, [#allocation6]
    $region13: #{model_forward.1} parent=1 // pred_fallthru
      _
    // Predicated region
    $region14: #{model_forward.1} parent=1 // pred_check
      _
    $region15: #{model_forward.1} parent=1 // pred_check_branch
      %53 = sbr.rel (0) target = $region17
    $region16: #{model_forward.1} parent=1 // pred_region
      %55 = vsyncadd [#allocation9], 0
      %s56 = sshll.u32 %s3, 4
      %s57 = int_to_ptr.hbm [resolvable:$true] %s56
      %s58 = sshll.u32 [#allocation8], 4
      %s59 = int_to_ptr.vmem [resolvable:$true] %s58
      %64 = dma.hbm_to_vmem [thread:$0]  %s57, 32768, %s59, [#allocation9], 256, 256, 16
    $region17: #{model_forward.1} parent=1 // pred_fallthru
      _
    // Predicated region
    $region18: #{model_forward.1} parent=1 // pred_check
      _
    $region19: #{model_forward.1} parent=1 // pred_check_branch
      %66 = sbr.rel (0) target = $region21
    $region20: #{model_forward.1} parent=1 // pred_region
      %68 = vsyncadd [#allocation9], 0
      %s70 = sshll.u32 %s4, 4
      %s71 = int_to_ptr.hbm [resolvable:$true] %s70
      %s72 = sshll.u32 [#allocation10], 4
      %s73 = int_to_ptr.vmem [resolvable:$true] %s72
      %75 = dma.hbm_to_vmem [thread:$0]  %s71, 64, %s73, [#allocation9]
    $region21: #{model_forward.1} parent=1 // pred_fallthru
      _
    // Predicated region
    $region22: #{model_forward.1} parent=1 // pred_check
      _
    $region23: #{model_forward.1} parent=1 // pred_check_branch
      %77 = sbr.rel (0) target = $region25
    $region24: #{model_forward.1} parent=1 // pred_region
      %79 = vsyncadd [#allocation12], 0
      %s80 = sshll.u32 %s5, 4
      %s81 = int_to_ptr.hbm [resolvable:$true] %s80
      %s82 = sshll.u32 [#allocation11], 4
      %s83 = int_to_ptr.vmem [resolvable:$true] %s82
      %88 = dma.hbm_to_vmem [thread:$0]  %s81, 4096, %s83, [#allocation12], 64, 64, 4
    $region25: #{model_forward.1} parent=1 // pred_fallthru
      _
    // Predicated region
    $region26: #{model_forward.1} parent=1 // pred_check
      _
    $region27: #{model_forward.1} parent=1 // pred_check_branch
      %90 = sbr.rel (0) target = $region29
    $region28: #{model_forward.1} parent=1 // pred_region
      _
    $region29: #{model_forward.1} parent=1 // pred_fallthru
      _
    // Predicated region
    $region30: #{model_forward.1} parent=1 // pred_check
      _
    $region31: #{model_forward.1} parent=1 // pred_check_branch
      %92 = sbr.rel (0) target = $region33
    $region32: #{model_forward.1} parent=1 // pred_region
      %94 = dma.done [#allocation3], 128
    $region33: #{model_forward.1} parent=1 // pred_fallthru
      _
    // Predicated region
    $region34: #{model_forward.1} parent=1 // pred_check
      _
    $region35: #{model_forward.1} parent=1 // pred_check_branch
      %96 = sbr.rel (0) target = $region37
    $region36: #{model_forward.1} parent=1 // pred_region
      %98 = dma.done [#allocation6], 2048
    $region37: #{model_forward.1} parent=1 // pred_fallthru
      _
    // Predicated region
    $region38: #{model_forward.1} parent=1 // pred_check
      _
    $region39: #{model_forward.1} parent=1 // pred_check_branch
      %100 = sbr.rel (0) target = $region41
    $region40: #{model_forward.1} parent=1 // pred_region
      %102 = dma.done [#allocation6], 128
    $region41: #{model_forward.1} parent=1 // pred_fallthru
      _
    // Predicated region
    $region42: #{model_forward.1} parent=1 // pred_check
      _
    $region43: #{model_forward.1} parent=1 // pred_check_branch
      %104 = sbr.rel (0) target = $region45
    $region44: #{model_forward.1} parent=1 // pred_region
      %106 = dma.done [#allocation9], 32768
    $region45: #{model_forward.1} parent=1 // pred_fallthru
      _
    // Predicated region
    $region46: #{model_forward.1} parent=1 // pred_check
      _
    $region47: #{model_forward.1} parent=1 // pred_check_branch
      %108 = sbr.rel (0) target = $region49
    $region48: #{model_forward.1} parent=1 // pred_region
      %110 = dma.done [#allocation9], 64
    $region49: #{model_forward.1} parent=1 // pred_fallthru
      _
    // Predicated region
    $region50: #{model_forward.1} parent=1 // pred_check
      _
    $region51: #{model_forward.1} parent=1 // pred_check_branch
      %112 = sbr.rel (0) target = $region53
    $region52: #{model_forward.1} parent=1 // pred_region
      %114 = dma.done [#allocation12], 4096
    $region53: #{model_forward.1} parent=1 // pred_fallthru
      _
    %v116 = vld [vmem:[#allocation2] sm:$0xff]
    %v117 = vpack.c.bf16 %v116, %v116
    %v118 = vld [vmem:[#allocation5] sm:$0xff]
    %v119 = vld [vmem:[#allocation5 + $0x8] sm:$0xff]
    %v120 = vld [vmem:[#allocation5 + $0x10] sm:$0xff]
    %v121 = vld [vmem:[#allocation5 + $0x18] sm:$0xff]
    %v122 = vld [vmem:[#allocation5 + $0x20] sm:$0xff]
    %v123 = vld [vmem:[#allocation5 + $0x28] sm:$0xff]
    %v124 = vld [vmem:[#allocation5 + $0x30] sm:$0xff]
    %v125 = vld [vmem:[#allocation5 + $0x38] sm:$0xff]
    %v126 = vld [vmem:[#allocation5 + $0x40] sm:$0xff]
    %v127 = vld [vmem:[#allocation5 + $0x48] sm:$0xff]
    %v128 = vld [vmem:[#allocation5 + $0x50] sm:$0xff]
    %v129 = vld [vmem:[#allocation5 + $0x58] sm:$0xff]
    %v130 = vld [vmem:[#allocation5 + $0x60] sm:$0xff]
    %v131 = vld [vmem:[#allocation5 + $0x68] sm:$0xff]
    %v132 = vld [vmem:[#allocation5 + $0x70] sm:$0xff]
    %v133 = vld [vmem:[#allocation5 + $0x78] sm:$0xff]
    %v134 = vld [vmem:[#allocation7] sm:$0xff]
    %v136 = vperm.slane %v134, 0
    %v137 = vperm.slane %v134, 1
    %v138 = vperm.slane %v134, 2
    %v139 = vperm.slane %v134, 3
    %v140 = vperm.slane %v134, 4
    %v141 = vperm.slane %v134, 5
    %v142 = vperm.slane %v134, 6
    %v143 = vperm.slane %v134, 7
    %v168 = vunpack.c.l.b16 %v118
    %v169 = vunpack.c.h.b16 %v118
    %v170 = vunpack.c.l.b16 %v119
    %v171 = vunpack.c.h.b16 %v119
    %v172 = vunpack.c.l.b16 %v120
    %v173 = vunpack.c.h.b16 %v120
    %v174 = vunpack.c.l.b16 %v121
    %v175 = vunpack.c.h.b16 %v121
    %v176 = vunpack.c.l.b16 %v122
    %v177 = vunpack.c.h.b16 %v122
    %v178 = vunpack.c.l.b16 %v123
    %v179 = vunpack.c.h.b16 %v123
    %v180 = vunpack.c.l.b16 %v124
    %v181 = vunpack.c.h.b16 %v124
    %v182 = vunpack.c.l.b16 %v125
    %v183 = vunpack.c.h.b16 %v125
    %v184 = vunpack.c.l.b16 %v126
    %v185 = vunpack.c.h.b16 %v126
    %v186 = vunpack.c.l.b16 %v127
    %v187 = vunpack.c.h.b16 %v127
    %v188 = vunpack.c.l.b16 %v128
    %v189 = vunpack.c.h.b16 %v128
    %v190 = vunpack.c.l.b16 %v129
    %v191 = vunpack.c.h.b16 %v129
    %v192 = vunpack.c.l.b16 %v130
    %v193 = vunpack.c.h.b16 %v130
    %v194 = vunpack.c.l.b16 %v131
    %v195 = vunpack.c.h.b16 %v131
    %v196 = vunpack.c.l.b16 %v132
    %v197 = vunpack.c.h.b16 %v132
    %v198 = vunpack.c.l.b16 %v133
    %v199 = vunpack.c.h.b16 %v133
    %v200 = vpack.c.b16 %v176, %v168
    %v201 = vpack.c.b16 %v177, %v169
    %v202 = vpack.c.b16 %v178, %v170
    %v203 = vpack.c.b16 %v179, %v171
    %v204 = vpack.c.b16 %v180, %v172
    %v205 = vpack.c.b16 %v181, %v173
    %v206 = vpack.c.b16 %v182, %v174
    %v207 = vpack.c.b16 %v183, %v175
    %v208 = vpack.c.b16 %v192, %v184
    %v209 = vpack.c.b16 %v193, %v185
    %v210 = vpack.c.b16 %v194, %v186
    %v211 = vpack.c.b16 %v195, %v187
    %v212 = vpack.c.b16 %v196, %v188
    %v213 = vpack.c.b16 %v197, %v189
    %v214 = vpack.c.b16 %v198, %v190
    %v215 = vpack.c.b16 %v199, %v191
    %vm232 = vcmask 261120
    %v234 = vsel %vm232, %v117, 0
    %236 = vmatpush.bf16.msra.mxu0 0
    %237 = vmatpush.bf16.msra.mxu0 0
    %238 = vmatpush.bf16.msra.mxu0 0
    %239 = vmatpush.bf16.msra.mxu0 0
    %240 = vmatpush.bf16.msra.mxu0 0
    %241 = vmatpush.bf16.msra.mxu0 0
    %242 = vmatpush.bf16.msra.mxu0 %v208
    %243 = vmatpush.bf16.msra.mxu0 %v200
    %244 = vmatmul.bf16.gmra.mxu0 %v234
    %v245 = vpop.f32.mrf.mxu0
    %v246 = vadd.f32 %v136, %v245
    %v247 = vpop.f32.mrf.mxu0
    %248 = vdwg.mxu0
    %249 = vmatpush.bf16.msra.mxu0 0
    %250 = vmatpush.bf16.msra.mxu0 0
    %251 = vmatpush.bf16.msra.mxu0 0
    %252 = vmatpush.bf16.msra.mxu0 0
    %253 = vmatpush.bf16.msra.mxu0 0
    %254 = vmatpush.bf16.msra.mxu0 0
    %255 = vmatpush.bf16.msra.mxu0 %v209
    %256 = vmatpush.bf16.msra.mxu0 %v201
    %257 = vmatmul.bf16.gmra.mxu0 %v234
    %v258 = vpop.f32.mrf.mxu0
    %v259 = vadd.f32 %v137, %v258
    %v260 = vpop.f32.mrf.mxu0
    %261 = vdwg.mxu0
    %262 = vmatpush.bf16.msra.mxu0 0
    %263 = vmatpush.bf16.msra.mxu0 0
    %264 = vmatpush.bf16.msra.mxu0 0
    %265 = vmatpush.bf16.msra.mxu0 0
    %266 = vmatpush.bf16.msra.mxu0 0
    %267 = vmatpush.bf16.msra.mxu0 0
    %268 = vmatpush.bf16.msra.mxu0 %v210
    %269 = vmatpush.bf16.msra.mxu0 %v202
    %270 = vmatmul.bf16.gmra.mxu0 %v234
    %v271 = vpop.f32.mrf.mxu0
    %v272 = vadd.f32 %v138, %v271
    %v273 = vpop.f32.mrf.mxu0
    %274 = vdwg.mxu0
    %275 = vmatpush.bf16.msra.mxu0 0
    %276 = vmatpush.bf16.msra.mxu0 0
    %277 = vmatpush.bf16.msra.mxu0 0
    %278 = vmatpush.bf16.msra.mxu0 0
    %279 = vmatpush.bf16.msra.mxu0 0
    %280 = vmatpush.bf16.msra.mxu0 0
    %281 = vmatpush.bf16.msra.mxu0 %v211
    %282 = vmatpush.bf16.msra.mxu0 %v203
    %283 = vmatmul.bf16.gmra.mxu0 %v234
    %v284 = vpop.f32.mrf.mxu0
    %v285 = vadd.f32 %v139, %v284
    %v286 = vpop.f32.mrf.mxu0
    %287 = vdwg.mxu0
    %288 = vmatpush.bf16.msra.mxu0 0
    %289 = vmatpush.bf16.msra.mxu0 0
    %290 = vmatpush.bf16.msra.mxu0 0
    %291 = vmatpush.bf16.msra.mxu0 0
    %292 = vmatpush.bf16.msra.mxu0 0
    %293 = vmatpush.bf16.msra.mxu0 0
    %294 = vmatpush.bf16.msra.mxu0 %v212
    %295 = vmatpush.bf16.msra.mxu0 %v204
    %296 = vmatmul.bf16.gmra.mxu0 %v234
    %v297 = vpop.f32.mrf.mxu0
    %v298 = vadd.f32 %v140, %v297
    %v299 = vpop.f32.mrf.mxu0
    %300 = vdwg.mxu0
    %301 = vmatpush.bf16.msra.mxu0 0
    %302 = vmatpush.bf16.msra.mxu0 0
    %303 = vmatpush.bf16.msra.mxu0 0
    %304 = vmatpush.bf16.msra.mxu0 0
    %305 = vmatpush.bf16.msra.mxu0 0
    %306 = vmatpush.bf16.msra.mxu0 0
    %307 = vmatpush.bf16.msra.mxu0 %v213
    %308 = vmatpush.bf16.msra.mxu0 %v205
    %309 = vmatmul.bf16.gmra.mxu0 %v234
    %v310 = vpop.f32.mrf.mxu0
    %v311 = vadd.f32 %v141, %v310
    %v312 = vpop.f32.mrf.mxu0
    %313 = vdwg.mxu0
    %314 = vmatpush.bf16.msra.mxu0 0
    %315 = vmatpush.bf16.msra.mxu0 0
    %316 = vmatpush.bf16.msra.mxu0 0
    %317 = vmatpush.bf16.msra.mxu0 0
    %318 = vmatpush.bf16.msra.mxu0 0
    %319 = vmatpush.bf16.msra.mxu0 0
    %320 = vmatpush.bf16.msra.mxu0 %v214
    %321 = vmatpush.bf16.msra.mxu0 %v206
    %322 = vmatmul.bf16.gmra.mxu0 %v234
    %v323 = vpop.f32.mrf.mxu0
    %v324 = vadd.f32 %v142, %v323
    %v325 = vpop.f32.mrf.mxu0
    %326 = vdwg.mxu0
    %327 = vmatpush.bf16.msra.mxu0 0
    %328 = vmatpush.bf16.msra.mxu0 0
    %329 = vmatpush.bf16.msra.mxu0 0
    %330 = vmatpush.bf16.msra.mxu0 0
    %331 = vmatpush.bf16.msra.mxu0 0
    %332 = vmatpush.bf16.msra.mxu0 0
    %333 = vmatpush.bf16.msra.mxu0 %v215
    %334 = vmatpush.bf16.msra.mxu0 %v207
    %335 = vmatmul.bf16.gmra.mxu0 %v234
    %v336 = vpop.f32.mrf.mxu0
    %v337 = vadd.f32 %v143, %v336
    %v338 = vpop.f32.mrf.mxu0
    %339 = vdwg.mxu0
    %v340 = vmax.f32 %v246, 0.0
    %v341 = vmax.f32 %v259, 0.0
    %v342 = vmax.f32 %v272, 0.0
    %v343 = vmax.f32 %v285, 0.0
    %v344 = vmax.f32 %v298, 0.0
    %v345 = vmax.f32 %v311, 0.0
    %v346 = vmax.f32 %v324, 0.0
    %v347 = vmax.f32 %v337, 0.0
    %v348 = vpack.c.bf16 %v340, %v340
    %v349 = vpack.c.bf16 %v341, %v341
    %v350 = vpack.c.bf16 %v342, %v342
    %v351 = vpack.c.bf16 %v343, %v343
    %v352 = vpack.c.bf16 %v344, %v344
    %v353 = vpack.c.bf16 %v345, %v345
    %v354 = vpack.c.bf16 %v346, %v346
    %v355 = vpack.c.bf16 %v347, %v347
    %v356 = vld [vmem:[#allocation8] sm:$0xff]
    %v357 = vld [vmem:[#allocation8 + $0x8] sm:$0xff]
    %v358 = vld [vmem:[#allocation8 + $0x10] sm:$0xff]
    %v359 = vld [vmem:[#allocation8 + $0x18] sm:$0xff]
    %v360 = vld [vmem:[#allocation8 + $0x20] sm:$0xff]
    %v361 = vld [vmem:[#allocation8 + $0x28] sm:$0xff]
    %v362 = vld [vmem:[#allocation8 + $0x30] sm:$0xff]
    %v363 = vld [vmem:[#allocation8 + $0x38] sm:$0xff]
    %v364 = vld [vmem:[#allocation8 + $0x40] sm:$0xff]
    %v365 = vld [vmem:[#allocation8 + $0x48] sm:$0xff]
    %v366 = vld [vmem:[#allocation8 + $0x50] sm:$0xff]
    %v367 = vld [vmem:[#allocation8 + $0x58] sm:$0xff]
    %v368 = vld [vmem:[#allocation8 + $0x60] sm:$0xff]
    %v369 = vld [vmem:[#allocation8 + $0x68] sm:$0xff]
    %v370 = vld [vmem:[#allocation8 + $0x70] sm:$0xff]
    %v371 = vld [vmem:[#allocation8 + $0x78] sm:$0xff]
    %v372 = vld [vmem:[#allocation8 + $0x80] sm:$0xff]
    %v373 = vld [vmem:[#allocation8 + $0x88] sm:$0xff]
    %v374 = vld [vmem:[#allocation8 + $0x90] sm:$0xff]
    %v375 = vld [vmem:[#allocation8 + $0x98] sm:$0xff]
    %v376 = vld [vmem:[#allocation8 + $0xa0] sm:$0xff]
    %v377 = vld [vmem:[#allocation8 + $0xa8] sm:$0xff]
    %v378 = vld [vmem:[#allocation8 + $0xb0] sm:$0xff]
    %v379 = vld [vmem:[#allocation8 + $0xb8] sm:$0xff]
    %v380 = vld [vmem:[#allocation8 + $0xc0] sm:$0xff]
    %v381 = vld [vmem:[#allocation8 + $0xc8] sm:$0xff]
    %v382 = vld [vmem:[#allocation8 + $0xd0] sm:$0xff]
    %v383 = vld [vmem:[#allocation8 + $0xd8] sm:$0xff]
    %v384 = vld [vmem:[#allocation8 + $0xe0] sm:$0xff]
    %v385 = vld [vmem:[#allocation8 + $0xe8] sm:$0xff]
    %v386 = vld [vmem:[#allocation8 + $0xf0] sm:$0xff]
    %v387 = vld [vmem:[#allocation8 + $0xf8] sm:$0xff]
    %v388 = vld [vmem:[#allocation8 + $0x100] sm:$0xff]
    %v389 = vld [vmem:[#allocation8 + $0x108] sm:$0xff]
    %v390 = vld [vmem:[#allocation8 + $0x110] sm:$0xff]
    %v391 = vld [vmem:[#allocation8 + $0x118] sm:$0xff]
    %v392 = vld [vmem:[#allocation8 + $0x120] sm:$0xff]
    %v393 = vld [vmem:[#allocation8 + $0x128] sm:$0xff]
    %v394 = vld [vmem:[#allocation8 + $0x130] sm:$0xff]
    %v395 = vld [vmem:[#allocation8 + $0x138] sm:$0xff]
    %v396 = vld [vmem:[#allocation8 + $0x140] sm:$0xff]
    %v397 = vld [vmem:[#allocation8 + $0x148] sm:$0xff]
    %v398 = vld [vmem:[#allocation8 + $0x150] sm:$0xff]
    %v399 = vld [vmem:[#allocation8 + $0x158] sm:$0xff]
    %v400 = vld [vmem:[#allocation8 + $0x160] sm:$0xff]
    %v401 = vld [vmem:[#allocation8 + $0x168] sm:$0xff]
    %v402 = vld [vmem:[#allocation8 + $0x170] sm:$0xff]
    %v403 = vld [vmem:[#allocation8 + $0x178] sm:$0xff]
    %v404 = vld [vmem:[#allocation8 + $0x180] sm:$0xff]
    %v405 = vld [vmem:[#allocation8 + $0x188] sm:$0xff]
    %v406 = vld [vmem:[#allocation8 + $0x190] sm:$0xff]
    %v407 = vld [vmem:[#allocation8 + $0x198] sm:$0xff]
    %v408 = vld [vmem:[#allocation8 + $0x1a0] sm:$0xff]
    %v409 = vld [vmem:[#allocation8 + $0x1a8] sm:$0xff]
    %v410 = vld [vmem:[#allocation8 + $0x1b0] sm:$0xff]
    %v411 = vld [vmem:[#allocation8 + $0x1b8] sm:$0xff]
    %v412 = vld [vmem:[#allocation8 + $0x1c0] sm:$0xff]
    %v413 = vld [vmem:[#allocation8 + $0x1c8] sm:$0xff]
    %v414 = vld [vmem:[#allocation8 + $0x1d0] sm:$0xff]
    %v415 = vld [vmem:[#allocation8 + $0x1d8] sm:$0xff]
    %v416 = vld [vmem:[#allocation8 + $0x1e0] sm:$0xff]
    %v417 = vld [vmem:[#allocation8 + $0x1e8] sm:$0xff]
    %v418 = vld [vmem:[#allocation8 + $0x1f0] sm:$0xff]
    %v419 = vld [vmem:[#allocation8 + $0x1f8] sm:$0xff]
    %v420 = vld [vmem:[#allocation8 + $0x200] sm:$0xff]
    %v421 = vld [vmem:[#allocation8 + $0x208] sm:$0xff]
    %v422 = vld [vmem:[#allocation8 + $0x210] sm:$0xff]
    %v423 = vld [vmem:[#allocation8 + $0x218] sm:$0xff]
    %v424 = vld [vmem:[#allocation8 + $0x220] sm:$0xff]
    %v425 = vld [vmem:[#allocation8 + $0x228] sm:$0xff]
    %v426 = vld [vmem:[#allocation8 + $0x230] sm:$0xff]
    %v427 = vld [vmem:[#allocation8 + $0x238] sm:$0xff]
    %v428 = vld [vmem:[#allocation8 + $0x240] sm:$0xff]
    %v429 = vld [vmem:[#allocation8 + $0x248] sm:$0xff]
    %v430 = vld [vmem:[#allocation8 + $0x250] sm:$0xff]
    %v431 = vld [vmem:[#allocation8 + $0x258] sm:$0xff]
    %v432 = vld [vmem:[#allocation8 + $0x260] sm:$0xff]
    %v433 = vld [vmem:[#allocation8 + $0x268] sm:$0xff]
    %v434 = vld [vmem:[#allocation8 + $0x270] sm:$0xff]
    %v435 = vld [vmem:[#allocation8 + $0x278] sm:$0xff]
    %v436 = vld [vmem:[#allocation8 + $0x280] sm:$0xff]
    %v437 = vld [vmem:[#allocation8 + $0x288] sm:$0xff]
    %v438 = vld [vmem:[#allocation8 + $0x290] sm:$0xff]
    %v439 = vld [vmem:[#allocation8 + $0x298] sm:$0xff]
    %v440 = vld [vmem:[#allocation8 + $0x2a0] sm:$0xff]
    %v441 = vld [vmem:[#allocation8 + $0x2a8] sm:$0xff]
    %v442 = vld [vmem:[#allocation8 + $0x2b0] sm:$0xff]
    %v443 = vld [vmem:[#allocation8 + $0x2b8] sm:$0xff]
    %v444 = vld [vmem:[#allocation8 + $0x2c0] sm:$0xff]
    %v445 = vld [vmem:[#allocation8 + $0x2c8] sm:$0xff]
    %v446 = vld [vmem:[#allocation8 + $0x2d0] sm:$0xff]
    %v447 = vld [vmem:[#allocation8 + $0x2d8] sm:$0xff]
    %v448 = vld [vmem:[#allocation8 + $0x2e0] sm:$0xff]
    %v449 = vld [vmem:[#allocation8 + $0x2e8] sm:$0xff]
    %v450 = vld [vmem:[#allocation8 + $0x2f0] sm:$0xff]
    %v451 = vld [vmem:[#allocation8 + $0x2f8] sm:$0xff]
    %v452 = vld [vmem:[#allocation8 + $0x300] sm:$0xff]
    %v453 = vld [vmem:[#allocation8 + $0x308] sm:$0xff]
    %v454 = vld [vmem:[#allocation8 + $0x310] sm:$0xff]
    %v455 = vld [vmem:[#allocation8 + $0x318] sm:$0xff]
    %v456 = vld [vmem:[#allocation8 + $0x320] sm:$0xff]
    %v457 = vld [vmem:[#allocation8 + $0x328] sm:$0xff]
    %v458 = vld [vmem:[#allocation8 + $0x330] sm:$0xff]
    %v459 = vld [vmem:[#allocation8 + $0x338] sm:$0xff]
    %v460 = vld [vmem:[#allocation8 + $0x340] sm:$0xff]
    %v461 = vld [vmem:[#allocation8 + $0x348] sm:$0xff]
    %v462 = vld [vmem:[#allocation8 + $0x350] sm:$0xff]
    %v463 = vld [vmem:[#allocation8 + $0x358] sm:$0xff]
    %v464 = vld [vmem:[#allocation8 + $0x360] sm:$0xff]
    %v465 = vld [vmem:[#allocation8 + $0x368] sm:$0xff]
    %v466 = vld [vmem:[#allocation8 + $0x370] sm:$0xff]
    %v467 = vld [vmem:[#allocation8 + $0x378] sm:$0xff]
    %v468 = vld [vmem:[#allocation8 + $0x380] sm:$0xff]
    %v469 = vld [vmem:[#allocation8 + $0x388] sm:$0xff]
    %v470 = vld [vmem:[#allocation8 + $0x390] sm:$0xff]
    %v471 = vld [vmem:[#allocation8 + $0x398] sm:$0xff]
    %v472 = vld [vmem:[#allocation8 + $0x3a0] sm:$0xff]
    %v473 = vld [vmem:[#allocation8 + $0x3a8] sm:$0xff]
    %v474 = vld [vmem:[#allocation8 + $0x3b0] sm:$0xff]
    %v475 = vld [vmem:[#allocation8 + $0x3b8] sm:$0xff]
    %v476 = vld [vmem:[#allocation8 + $0x3c0] sm:$0xff]
    %v477 = vld [vmem:[#allocation8 + $0x3c8] sm:$0xff]
    %v478 = vld [vmem:[#allocation8 + $0x3d0] sm:$0xff]
    %v479 = vld [vmem:[#allocation8 + $0x3d8] sm:$0xff]
    %v480 = vld [vmem:[#allocation8 + $0x3e0] sm:$0xff]
    %v481 = vld [vmem:[#allocation8 + $0x3e8] sm:$0xff]
    %v482 = vld [vmem:[#allocation8 + $0x3f0] sm:$0xff]
    %v483 = vld [vmem:[#allocation8 + $0x3f8] sm:$0xff]
    %v484 = vld [vmem:[#allocation8 + $0x400] sm:$0xff]
    %v485 = vld [vmem:[#allocation8 + $0x408] sm:$0xff]
    %v486 = vld [vmem:[#allocation8 + $0x410] sm:$0xff]
    %v487 = vld [vmem:[#allocation8 + $0x418] sm:$0xff]
    %v488 = vld [vmem:[#allocation8 + $0x420] sm:$0xff]
    %v489 = vld [vmem:[#allocation8 + $0x428] sm:$0xff]
    %v490 = vld [vmem:[#allocation8 + $0x430] sm:$0xff]
    %v491 = vld [vmem:[#allocation8 + $0x438] sm:$0xff]
    %v492 = vld [vmem:[#allocation8 + $0x440] sm:$0xff]
    %v493 = vld [vmem:[#allocation8 + $0x448] sm:$0xff]
    %v494 = vld [vmem:[#allocation8 + $0x450] sm:$0xff]
    %v495 = vld [vmem:[#allocation8 + $0x458] sm:$0xff]
    %v496 = vld [vmem:[#allocation8 + $0x460] sm:$0xff]
    %v497 = vld [vmem:[#allocation8 + $0x468] sm:$0xff]
    %v498 = vld [vmem:[#allocation8 + $0x470] sm:$0xff]
    %v499 = vld [vmem:[#allocation8 + $0x478] sm:$0xff]
    %v500 = vld [vmem:[#allocation8 + $0x480] sm:$0xff]
    %v501 = vld [vmem:[#allocation8 + $0x488] sm:$0xff]
    %v502 = vld [vmem:[#allocation8 + $0x490] sm:$0xff]
    %v503 = vld [vmem:[#allocation8 + $0x498] sm:$0xff]
    %v504 = vld [vmem:[#allocation8 + $0x4a0] sm:$0xff]
    %v505 = vld [vmem:[#allocation8 + $0x4a8] sm:$0xff]
    %v506 = vld [vmem:[#allocation8 + $0x4b0] sm:$0xff]
    %v507 = vld [vmem:[#allocation8 + $0x4b8] sm:$0xff]
    %v508 = vld [vmem:[#allocation8 + $0x4c0] sm:$0xff]
    %v509 = vld [vmem:[#allocation8 + $0x4c8] sm:$0xff]
    %v510 = vld [vmem:[#allocation8 + $0x4d0] sm:$0xff]
    %v511 = vld [vmem:[#allocation8 + $0x4d8] sm:$0xff]
    %v512 = vld [vmem:[#allocation8 + $0x4e0] sm:$0xff]
    %v513 = vld [vmem:[#allocation8 + $0x4e8] sm:$0xff]
    %v514 = vld [vmem:[#allocation8 + $0x4f0] sm:$0xff]
    %v515 = vld [vmem:[#allocation8 + $0x4f8] sm:$0xff]
    %v516 = vld [vmem:[#allocation8 + $0x500] sm:$0xff]
    %v517 = vld [vmem:[#allocation8 + $0x508] sm:$0xff]
    %v518 = vld [vmem:[#allocation8 + $0x510] sm:$0xff]
    %v519 = vld [vmem:[#allocation8 + $0x518] sm:$0xff]
    %v520 = vld [vmem:[#allocation8 + $0x520] sm:$0xff]
    %v521 = vld [vmem:[#allocation8 + $0x528] sm:$0xff]
    %v522 = vld [vmem:[#allocation8 + $0x530] sm:$0xff]
    %v523 = vld [vmem:[#allocation8 + $0x538] sm:$0xff]
    %v524 = vld [vmem:[#allocation8 + $0x540] sm:$0xff]
    %v525 = vld [vmem:[#allocation8 + $0x548] sm:$0xff]
    %v526 = vld [vmem:[#allocation8 + $0x550] sm:$0xff]
    %v527 = vld [vmem:[#allocation8 + $0x558] sm:$0xff]
    %v528 = vld [vmem:[#allocation8 + $0x560] sm:$0xff]
    %v529 = vld [vmem:[#allocation8 + $0x568] sm:$0xff]
    %v530 = vld [vmem:[#allocation8 + $0x570] sm:$0xff]
    %v531 = vld [vmem:[#allocation8 + $0x578] sm:$0xff]
    %v532 = vld [vmem:[#allocation8 + $0x580] sm:$0xff]
    %v533 = vld [vmem:[#allocation8 + $0x588] sm:$0xff]
    %v534 = vld [vmem:[#allocation8 + $0x590] sm:$0xff]
    %v535 = vld [vmem:[#allocation8 + $0x598] sm:$0xff]
    %v536 = vld [vmem:[#allocation8 + $0x5a0] sm:$0xff]
    %v537 = vld [vmem:[#allocation8 + $0x5a8] sm:$0xff]
    %v538 = vld [vmem:[#allocation8 + $0x5b0] sm:$0xff]
    %v539 = vld [vmem:[#allocation8 + $0x5b8] sm:$0xff]
    %v540 = vld [vmem:[#allocation8 + $0x5c0] sm:$0xff]
    %v541 = vld [vmem:[#allocation8 + $0x5c8] sm:$0xff]
    %v542 = vld [vmem:[#allocation8 + $0x5d0] sm:$0xff]
    %v543 = vld [vmem:[#allocation8 + $0x5d8] sm:$0xff]
    %v544 = vld [vmem:[#allocation8 + $0x5e0] sm:$0xff]
    %v545 = vld [vmem:[#allocation8 + $0x5e8] sm:$0xff]
    %v546 = vld [vmem:[#allocation8 + $0x5f0] sm:$0xff]
    %v547 = vld [vmem:[#allocation8 + $0x5f8] sm:$0xff]
    %v548 = vld [vmem:[#allocation8 + $0x600] sm:$0xff]
    %v549 = vld [vmem:[#allocation8 + $0x608] sm:$0xff]
    %v550 = vld [vmem:[#allocation8 + $0x610] sm:$0xff]
    %v551 = vld [vmem:[#allocation8 + $0x618] sm:$0xff]
    %v552 = vld [vmem:[#allocation8 + $0x620] sm:$0xff]
    %v553 = vld [vmem:[#allocation8 + $0x628] sm:$0xff]
    %v554 = vld [vmem:[#allocation8 + $0x630] sm:$0xff]
    %v555 = vld [vmem:[#allocation8 + $0x638] sm:$0xff]
    %v556 = vld [vmem:[#allocation8 + $0x640] sm:$0xff]
    %v557 = vld [vmem:[#allocation8 + $0x648] sm:$0xff]
    %v558 = vld [vmem:[#allocation8 + $0x650] sm:$0xff]
    %v559 = vld [vmem:[#allocation8 + $0x658] sm:$0xff]
    %v560 = vld [vmem:[#allocation8 + $0x660] sm:$0xff]
    %v561 = vld [vmem:[#allocation8 + $0x668] sm:$0xff]
    %v562 = vld [vmem:[#allocation8 + $0x670] sm:$0xff]
    %v563 = vld [vmem:[#allocation8 + $0x678] sm:$0xff]
    %v564 = vld [vmem:[#allocation8 + $0x680] sm:$0xff]
    %v565 = vld [vmem:[#allocation8 + $0x688] sm:$0xff]
    %v566 = vld [vmem:[#allocation8 + $0x690] sm:$0xff]
    %v567 = vld [vmem:[#allocation8 + $0x698] sm:$0xff]
    %v568 = vld [vmem:[#allocation8 + $0x6a0] sm:$0xff]
    %v569 = vld [vmem:[#allocation8 + $0x6a8] sm:$0xff]
    %v570 = vld [vmem:[#allocation8 + $0x6b0] sm:$0xff]
    %v571 = vld [vmem:[#allocation8 + $0x6b8] sm:$0xff]
    %v572 = vld [vmem:[#allocation8 + $0x6c0] sm:$0xff]
    %v573 = vld [vmem:[#allocation8 + $0x6c8] sm:$0xff]
    %v574 = vld [vmem:[#allocation8 + $0x6d0] sm:$0xff]
    %v575 = vld [vmem:[#allocation8 + $0x6d8] sm:$0xff]
    %v576 = vld [vmem:[#allocation8 + $0x6e0] sm:$0xff]
    %v577 = vld [vmem:[#allocation8 + $0x6e8] sm:$0xff]
    %v578 = vld [vmem:[#allocation8 + $0x6f0] sm:$0xff]
    %v579 = vld [vmem:[#allocation8 + $0x6f8] sm:$0xff]
    %v580 = vld [vmem:[#allocation8 + $0x700] sm:$0xff]
    %v581 = vld [vmem:[#allocation8 + $0x708] sm:$0xff]
    %v582 = vld [vmem:[#allocation8 + $0x710] sm:$0xff]
    %v583 = vld [vmem:[#allocation8 + $0x718] sm:$0xff]
    %v584 = vld [vmem:[#allocation8 + $0x720] sm:$0xff]
    %v585 = vld [vmem:[#allocation8 + $0x728] sm:$0xff]
    %v586 = vld [vmem:[#allocation8 + $0x730] sm:$0xff]
    %v587 = vld [vmem:[#allocation8 + $0x738] sm:$0xff]
    %v588 = vld [vmem:[#allocation8 + $0x740] sm:$0xff]
    %v589 = vld [vmem:[#allocation8 + $0x748] sm:$0xff]
    %v590 = vld [vmem:[#allocation8 + $0x750] sm:$0xff]
    %v591 = vld [vmem:[#allocation8 + $0x758] sm:$0xff]
    %v592 = vld [vmem:[#allocation8 + $0x760] sm:$0xff]
    %v593 = vld [vmem:[#allocation8 + $0x768] sm:$0xff]
    %v594 = vld [vmem:[#allocation8 + $0x770] sm:$0xff]
    %v595 = vld [vmem:[#allocation8 + $0x778] sm:$0xff]
    %v596 = vld [vmem:[#allocation8 + $0x780] sm:$0xff]
    %v597 = vld [vmem:[#allocation8 + $0x788] sm:$0xff]
    %v598 = vld [vmem:[#allocation8 + $0x790] sm:$0xff]
    %v599 = vld [vmem:[#allocation8 + $0x798] sm:$0xff]
    %v600 = vld [vmem:[#allocation8 + $0x7a0] sm:$0xff]
    %v601 = vld [vmem:[#allocation8 + $0x7a8] sm:$0xff]
    %v602 = vld [vmem:[#allocation8 + $0x7b0] sm:$0xff]
    %v603 = vld [vmem:[#allocation8 + $0x7b8] sm:$0xff]
    %v604 = vld [vmem:[#allocation8 + $0x7c0] sm:$0xff]
    %v605 = vld [vmem:[#allocation8 + $0x7c8] sm:$0xff]
    %v606 = vld [vmem:[#allocation8 + $0x7d0] sm:$0xff]
    %v607 = vld [vmem:[#allocation8 + $0x7d8] sm:$0xff]
    %v608 = vld [vmem:[#allocation8 + $0x7e0] sm:$0xff]
    %v609 = vld [vmem:[#allocation8 + $0x7e8] sm:$0xff]
    %v610 = vld [vmem:[#allocation8 + $0x7f0] sm:$0xff]
    %v611 = vld [vmem:[#allocation8 + $0x7f8] sm:$0xff]
    %v612 = vld [vmem:[#allocation10] sm:$0xf]
    %v614 = vperm.slane %v612, 0
    %v615 = vperm.slane %v612, 1
    %v616 = vperm.slane %v612, 2
    %v617 = vperm.slane %v612, 3
    %v878 = vunpack.c.l.b16 %v356
    %v879 = vunpack.c.h.b16 %v356
    %v880 = vunpack.c.l.b16 %v357
    %v881 = vunpack.c.h.b16 %v357
    %v882 = vunpack.c.l.b16 %v358
    %v883 = vunpack.c.h.b16 %v358
    %v884 = vunpack.c.l.b16 %v359
    %v885 = vunpack.c.h.b16 %v359
    %v886 = vunpack.c.l.b16 %v360
    %v887 = vunpack.c.h.b16 %v360
    %v888 = vunpack.c.l.b16 %v361
    %v889 = vunpack.c.h.b16 %v361
    %v890 = vunpack.c.l.b16 %v362
    %v891 = vunpack.c.h.b16 %v362
    %v892 = vunpack.c.l.b16 %v363
    %v893 = vunpack.c.h.b16 %v363
    %v894 = vunpack.c.l.b16 %v364
    %v895 = vunpack.c.h.b16 %v364
    %v896 = vunpack.c.l.b16 %v365
    %v897 = vunpack.c.h.b16 %v365
    %v898 = vunpack.c.l.b16 %v366
    %v899 = vunpack.c.h.b16 %v366
    %v900 = vunpack.c.l.b16 %v367
    %v901 = vunpack.c.h.b16 %v367
    %v902 = vunpack.c.l.b16 %v368
    %v903 = vunpack.c.h.b16 %v368
    %v904 = vunpack.c.l.b16 %v369
    %v905 = vunpack.c.h.b16 %v369
    %v906 = vunpack.c.l.b16 %v370
    %v907 = vunpack.c.h.b16 %v370
    %v908 = vunpack.c.l.b16 %v371
    %v909 = vunpack.c.h.b16 %v371
    %v910 = vunpack.c.l.b16 %v372
    %v911 = vunpack.c.h.b16 %v372
    %v912 = vunpack.c.l.b16 %v373
    %v913 = vunpack.c.h.b16 %v373
    %v914 = vunpack.c.l.b16 %v374
    %v915 = vunpack.c.h.b16 %v374
    %v916 = vunpack.c.l.b16 %v375
    %v917 = vunpack.c.h.b16 %v375
    %v918 = vunpack.c.l.b16 %v376
    %v919 = vunpack.c.h.b16 %v376
    %v920 = vunpack.c.l.b16 %v377
    %v921 = vunpack.c.h.b16 %v377
    %v922 = vunpack.c.l.b16 %v378
    %v923 = vunpack.c.h.b16 %v378
    %v924 = vunpack.c.l.b16 %v379
    %v925 = vunpack.c.h.b16 %v379
    %v926 = vunpack.c.l.b16 %v380
    %v927 = vunpack.c.h.b16 %v380
    %v928 = vunpack.c.l.b16 %v381
    %v929 = vunpack.c.h.b16 %v381
    %v930 = vunpack.c.l.b16 %v382
    %v931 = vunpack.c.h.b16 %v382
    %v932 = vunpack.c.l.b16 %v383
    %v933 = vunpack.c.h.b16 %v383
    %v934 = vunpack.c.l.b16 %v384
    %v935 = vunpack.c.h.b16 %v384
    %v936 = vunpack.c.l.b16 %v385
    %v937 = vunpack.c.h.b16 %v385
    %v938 = vunpack.c.l.b16 %v386
    %v939 = vunpack.c.h.b16 %v386
    %v940 = vunpack.c.l.b16 %v387
    %v941 = vunpack.c.h.b16 %v387
    %v942 = vunpack.c.l.b16 %v388
    %v943 = vunpack.c.h.b16 %v388
    %v944 = vunpack.c.l.b16 %v389
    %v945 = vunpack.c.h.b16 %v389
    %v946 = vunpack.c.l.b16 %v390
    %v947 = vunpack.c.h.b16 %v390
    %v948 = vunpack.c.l.b16 %v391
    %v949 = vunpack.c.h.b16 %v391
    %v950 = vunpack.c.l.b16 %v392
    %v951 = vunpack.c.h.b16 %v392
    %v952 = vunpack.c.l.b16 %v393
    %v953 = vunpack.c.h.b16 %v393
    %v954 = vunpack.c.l.b16 %v394
    %v955 = vunpack.c.h.b16 %v394
    %v956 = vunpack.c.l.b16 %v395
    %v957 = vunpack.c.h.b16 %v395
    %v958 = vunpack.c.l.b16 %v396
    %v959 = vunpack.c.h.b16 %v396
    %v960 = vunpack.c.l.b16 %v397
    %v961 = vunpack.c.h.b16 %v397
    %v962 = vunpack.c.l.b16 %v398
    %v963 = vunpack.c.h.b16 %v398
    %v964 = vunpack.c.l.b16 %v399
    %v965 = vunpack.c.h.b16 %v399
    %v966 = vunpack.c.l.b16 %v400
    %v967 = vunpack.c.h.b16 %v400
    %v968 = vunpack.c.l.b16 %v401
    %v969 = vunpack.c.h.b16 %v401
    %v970 = vunpack.c.l.b16 %v402
    %v971 = vunpack.c.h.b16 %v402
    %v972 = vunpack.c.l.b16 %v403
    %v973 = vunpack.c.h.b16 %v403
    %v974 = vunpack.c.l.b16 %v404
    %v975 = vunpack.c.h.b16 %v404
    %v976 = vunpack.c.l.b16 %v405
    %v977 = vunpack.c.h.b16 %v405
    %v978 = vunpack.c.l.b16 %v406
    %v979 = vunpack.c.h.b16 %v406
    %v980 = vunpack.c.l.b16 %v407
    %v981 = vunpack.c.h.b16 %v407
    %v982 = vunpack.c.l.b16 %v408
    %v983 = vunpack.c.h.b16 %v408
    %v984 = vunpack.c.l.b16 %v409
    %v985 = vunpack.c.h.b16 %v409
    %v986 = vunpack.c.l.b16 %v410
    %v987 = vunpack.c.h.b16 %v410
    %v988 = vunpack.c.l.b16 %v411
    %v989 = vunpack.c.h.b16 %v411
    %v990 = vunpack.c.l.b16 %v412
    %v991 = vunpack.c.h.b16 %v412
    %v992 = vunpack.c.l.b16 %v413
    %v993 = vunpack.c.h.b16 %v413
    %v994 = vunpack.c.l.b16 %v414
    %v995 = vunpack.c.h.b16 %v414
    %v996 = vunpack.c.l.b16 %v415
    %v997 = vunpack.c.h.b16 %v415
    %v998 = vunpack.c.l.b16 %v416
    %v999 = vunpack.c.h.b16 %v416
    %v1000 = vunpack.c.l.b16 %v417
    %v1001 = vunpack.c.h.b16 %v417
    %v1002 = vunpack.c.l.b16 %v418
    %v1003 = vunpack.c.h.b16 %v418
    %v1004 = vunpack.c.l.b16 %v419
    %v1005 = vunpack.c.h.b16 %v419
    %v1006 = vunpack.c.l.b16 %v420
    %v1007 = vunpack.c.h.b16 %v420
    %v1008 = vunpack.c.l.b16 %v421
    %v1009 = vunpack.c.h.b16 %v421
    %v1010 = vunpack.c.l.b16 %v422
    %v1011 = vunpack.c.h.b16 %v422
    %v1012 = vunpack.c.l.b16 %v423
    %v1013 = vunpack.c.h.b16 %v423
    %v1014 = vunpack.c.l.b16 %v424
    %v1015 = vunpack.c.h.b16 %v424
    %v1016 = vunpack.c.l.b16 %v425
    %v1017 = vunpack.c.h.b16 %v425
    %v1018 = vunpack.c.l.b16 %v426
    %v1019 = vunpack.c.h.b16 %v426
    %v1020 = vunpack.c.l.b16 %v427
    %v1021 = vunpack.c.h.b16 %v427
    %v1022 = vunpack.c.l.b16 %v428
    %v1023 = vunpack.c.h.b16 %v428
    %v1024 = vunpack.c.l.b16 %v429
    %v1025 = vunpack.c.h.b16 %v429
    %v1026 = vunpack.c.l.b16 %v430
    %v1027 = vunpack.c.h.b16 %v430
    %v1028 = vunpack.c.l.b16 %v431
    %v1029 = vunpack.c.h.b16 %v431
    %v1030 = vunpack.c.l.b16 %v432
    %v1031 = vunpack.c.h.b16 %v432
    %v1032 = vunpack.c.l.b16 %v433
    %v1033 = vunpack.c.h.b16 %v433
    %v1034 = vunpack.c.l.b16 %v434
    %v1035 = vunpack.c.h.b16 %v434
    %v1036 = vunpack.c.l.b16 %v435
    %v1037 = vunpack.c.h.b16 %v435
    %v1038 = vunpack.c.l.b16 %v436
    %v1039 = vunpack.c.h.b16 %v436
    %v1040 = vunpack.c.l.b16 %v437
    %v1041 = vunpack.c.h.b16 %v437
    %v1042 = vunpack.c.l.b16 %v438
    %v1043 = vunpack.c.h.b16 %v438
    %v1044 = vunpack.c.l.b16 %v439
    %v1045 = vunpack.c.h.b16 %v439
    %v1046 = vunpack.c.l.b16 %v440
    %v1047 = vunpack.c.h.b16 %v440
    %v1048 = vunpack.c.l.b16 %v441
    %v1049 = vunpack.c.h.b16 %v441
    %v1050 = vunpack.c.l.b16 %v442
    %v1051 = vunpack.c.h.b16 %v442
    %v1052 = vunpack.c.l.b16 %v443
    %v1053 = vunpack.c.h.b16 %v443
    %v1054 = vunpack.c.l.b16 %v444
    %v1055 = vunpack.c.h.b16 %v444
    %v1056 = vunpack.c.l.b16 %v445
    %v1057 = vunpack.c.h.b16 %v445
    %v1058 = vunpack.c.l.b16 %v446
    %v1059 = vunpack.c.h.b16 %v446
    %v1060 = vunpack.c.l.b16 %v447
    %v1061 = vunpack.c.h.b16 %v447
    %v1062 = vunpack.c.l.b16 %v448
    %v1063 = vunpack.c.h.b16 %v448
    %v1064 = vunpack.c.l.b16 %v449
    %v1065 = vunpack.c.h.b16 %v449
    %v1066 = vunpack.c.l.b16 %v450
    %v1067 = vunpack.c.h.b16 %v450
    %v1068 = vunpack.c.l.b16 %v451
    %v1069 = vunpack.c.h.b16 %v451
    %v1070 = vunpack.c.l.b16 %v452
    %v1071 = vunpack.c.h.b16 %v452
    %v1072 = vunpack.c.l.b16 %v453
    %v1073 = vunpack.c.h.b16 %v453
    %v1074 = vunpack.c.l.b16 %v454
    %v1075 = vunpack.c.h.b16 %v454
    %v1076 = vunpack.c.l.b16 %v455
    %v1077 = vunpack.c.h.b16 %v455
    %v1078 = vunpack.c.l.b16 %v456
    %v1079 = vunpack.c.h.b16 %v456
    %v1080 = vunpack.c.l.b16 %v457
    %v1081 = vunpack.c.h.b16 %v457
    %v1082 = vunpack.c.l.b16 %v458
    %v1083 = vunpack.c.h.b16 %v458
    %v1084 = vunpack.c.l.b16 %v459
    %v1085 = vunpack.c.h.b16 %v459
    %v1086 = vunpack.c.l.b16 %v460
    %v1087 = vunpack.c.h.b16 %v460
    %v1088 = vunpack.c.l.b16 %v461
    %v1089 = vunpack.c.h.b16 %v461
    %v1090 = vunpack.c.l.b16 %v462
    %v1091 = vunpack.c.h.b16 %v462
    %v1092 = vunpack.c.l.b16 %v463
    %v1093 = vunpack.c.h.b16 %v463
    %v1094 = vunpack.c.l.b16 %v464
    %v1095 = vunpack.c.h.b16 %v464
    %v1096 = vunpack.c.l.b16 %v465
    %v1097 = vunpack.c.h.b16 %v465
    %v1098 = vunpack.c.l.b16 %v466
    %v1099 = vunpack.c.h.b16 %v466
    %v1100 = vunpack.c.l.b16 %v467
    %v1101 = vunpack.c.h.b16 %v467
    %v1102 = vunpack.c.l.b16 %v468
    %v1103 = vunpack.c.h.b16 %v468
    %v1104 = vunpack.c.l.b16 %v469
    %v1105 = vunpack.c.h.b16 %v469
    %v1106 = vunpack.c.l.b16 %v470
    %v1107 = vunpack.c.h.b16 %v470
    %v1108 = vunpack.c.l.b16 %v471
    %v1109 = vunpack.c.h.b16 %v471
    %v1110 = vunpack.c.l.b16 %v472
    %v1111 = vunpack.c.h.b16 %v472
    %v1112 = vunpack.c.l.b16 %v473
    %v1113 = vunpack.c.h.b16 %v473
    %v1114 = vunpack.c.l.b16 %v474
    %v1115 = vunpack.c.h.b16 %v474
    %v1116 = vunpack.c.l.b16 %v475
    %v1117 = vunpack.c.h.b16 %v475
    %v1118 = vunpack.c.l.b16 %v476
    %v1119 = vunpack.c.h.b16 %v476
    %v1120 = vunpack.c.l.b16 %v477
    %v1121 = vunpack.c.h.b16 %v477
    %v1122 = vunpack.c.l.b16 %v478
    %v1123 = vunpack.c.h.b16 %v478
    %v1124 = vunpack.c.l.b16 %v479
    %v1125 = vunpack.c.h.b16 %v479
    %v1126 = vunpack.c.l.b16 %v480
    %v1127 = vunpack.c.h.b16 %v480
    %v1128 = vunpack.c.l.b16 %v481
    %v1129 = vunpack.c.h.b16 %v481
    %v1130 = vunpack.c.l.b16 %v482
    %v1131 = vunpack.c.h.b16 %v482
    %v1132 = vunpack.c.l.b16 %v483
    %v1133 = vunpack.c.h.b16 %v483
    %v1134 = vunpack.c.l.b16 %v484
    %v1135 = vunpack.c.h.b16 %v484
    %v1136 = vunpack.c.l.b16 %v485
    %v1137 = vunpack.c.h.b16 %v485
    %v1138 = vunpack.c.l.b16 %v486
    %v1139 = vunpack.c.h.b16 %v486
    %v1140 = vunpack.c.l.b16 %v487
    %v1141 = vunpack.c.h.b16 %v487
    %v1142 = vunpack.c.l.b16 %v488
    %v1143 = vunpack.c.h.b16 %v488
    %v1144 = vunpack.c.l.b16 %v489
    %v1145 = vunpack.c.h.b16 %v489
    %v1146 = vunpack.c.l.b16 %v490
    %v1147 = vunpack.c.h.b16 %v490
    %v1148 = vunpack.c.l.b16 %v491
    %v1149 = vunpack.c.h.b16 %v491
    %v1150 = vunpack.c.l.b16 %v492
    %v1151 = vunpack.c.h.b16 %v492
    %v1152 = vunpack.c.l.b16 %v493
    %v1153 = vunpack.c.h.b16 %v493
    %v1154 = vunpack.c.l.b16 %v494
    %v1155 = vunpack.c.h.b16 %v494
    %v1156 = vunpack.c.l.b16 %v495
    %v1157 = vunpack.c.h.b16 %v495
    %v1158 = vunpack.c.l.b16 %v496
    %v1159 = vunpack.c.h.b16 %v496
    %v1160 = vunpack.c.l.b16 %v497
    %v1161 = vunpack.c.h.b16 %v497
    %v1162 = vunpack.c.l.b16 %v498
    %v1163 = vunpack.c.h.b16 %v498
    %v1164 = vunpack.c.l.b16 %v499
    %v1165 = vunpack.c.h.b16 %v499
    %v1166 = vunpack.c.l.b16 %v500
    %v1167 = vunpack.c.h.b16 %v500
    %v1168 = vunpack.c.l.b16 %v501
    %v1169 = vunpack.c.h.b16 %v501
    %v1170 = vunpack.c.l.b16 %v502
    %v1171 = vunpack.c.h.b16 %v502
    %v1172 = vunpack.c.l.b16 %v503
    %v1173 = vunpack.c.h.b16 %v503
    %v1174 = vunpack.c.l.b16 %v504
    %v1175 = vunpack.c.h.b16 %v504
    %v1176 = vunpack.c.l.b16 %v505
    %v1177 = vunpack.c.h.b16 %v505
    %v1178 = vunpack.c.l.b16 %v506
    %v1179 = vunpack.c.h.b16 %v506
    %v1180 = vunpack.c.l.b16 %v507
    %v1181 = vunpack.c.h.b16 %v507
    %v1182 = vunpack.c.l.b16 %v508
    %v1183 = vunpack.c.h.b16 %v508
    %v1184 = vunpack.c.l.b16 %v509
    %v1185 = vunpack.c.h.b16 %v509
    %v1186 = vunpack.c.l.b16 %v510
    %v1187 = vunpack.c.h.b16 %v510
    %v1188 = vunpack.c.l.b16 %v511
    %v1189 = vunpack.c.h.b16 %v511
    %v1190 = vunpack.c.l.b16 %v512
    %v1191 = vunpack.c.h.b16 %v512
    %v1192 = vunpack.c.l.b16 %v513
    %v1193 = vunpack.c.h.b16 %v513
    %v1194 = vunpack.c.l.b16 %v514
    %v1195 = vunpack.c.h.b16 %v514
    %v1196 = vunpack.c.l.b16 %v515
    %v1197 = vunpack.c.h.b16 %v515
    %v1198 = vunpack.c.l.b16 %v516
    %v1199 = vunpack.c.h.b16 %v516
    %v1200 = vunpack.c.l.b16 %v517
    %v1201 = vunpack.c.h.b16 %v517
    %v1202 = vunpack.c.l.b16 %v518
    %v1203 = vunpack.c.h.b16 %v518
    %v1204 = vunpack.c.l.b16 %v519
    %v1205 = vunpack.c.h.b16 %v519
    %v1206 = vunpack.c.l.b16 %v520
    %v1207 = vunpack.c.h.b16 %v520
    %v1208 = vunpack.c.l.b16 %v521
    %v1209 = vunpack.c.h.b16 %v521
    %v1210 = vunpack.c.l.b16 %v522
    %v1211 = vunpack.c.h.b16 %v522
    %v1212 = vunpack.c.l.b16 %v523
    %v1213 = vunpack.c.h.b16 %v523
    %v1214 = vunpack.c.l.b16 %v524
    %v1215 = vunpack.c.h.b16 %v524
    %v1216 = vunpack.c.l.b16 %v525
    %v1217 = vunpack.c.h.b16 %v525
    %v1218 = vunpack.c.l.b16 %v526
    %v1219 = vunpack.c.h.b16 %v526
    %v1220 = vunpack.c.l.b16 %v527
    %v1221 = vunpack.c.h.b16 %v527
    %v1222 = vunpack.c.l.b16 %v528
    %v1223 = vunpack.c.h.b16 %v528
    %v1224 = vunpack.c.l.b16 %v529
    %v1225 = vunpack.c.h.b16 %v529
    %v1226 = vunpack.c.l.b16 %v530
    %v1227 = vunpack.c.h.b16 %v530
    %v1228 = vunpack.c.l.b16 %v531
    %v1229 = vunpack.c.h.b16 %v531
    %v1230 = vunpack.c.l.b16 %v532
    %v1231 = vunpack.c.h.b16 %v532
    %v1232 = vunpack.c.l.b16 %v533
    %v1233 = vunpack.c.h.b16 %v533
    %v1234 = vunpack.c.l.b16 %v534
    %v1235 = vunpack.c.h.b16 %v534
    %v1236 = vunpack.c.l.b16 %v535
    %v1237 = vunpack.c.h.b16 %v535
    %v1238 = vunpack.c.l.b16 %v536
    %v1239 = vunpack.c.h.b16 %v536
    %v1240 = vunpack.c.l.b16 %v537
    %v1241 = vunpack.c.h.b16 %v537
    %v1242 = vunpack.c.l.b16 %v538
    %v1243 = vunpack.c.h.b16 %v538
    %v1244 = vunpack.c.l.b16 %v539
    %v1245 = vunpack.c.h.b16 %v539
    %v1246 = vunpack.c.l.b16 %v540
    %v1247 = vunpack.c.h.b16 %v540
    %v1248 = vunpack.c.l.b16 %v541
    %v1249 = vunpack.c.h.b16 %v541
    %v1250 = vunpack.c.l.b16 %v542
    %v1251 = vunpack.c.h.b16 %v542
    %v1252 = vunpack.c.l.b16 %v543
    %v1253 = vunpack.c.h.b16 %v543
    %v1254 = vunpack.c.l.b16 %v544
    %v1255 = vunpack.c.h.b16 %v544
    %v1256 = vunpack.c.l.b16 %v545
    %v1257 = vunpack.c.h.b16 %v545
    %v1258 = vunpack.c.l.b16 %v546
    %v1259 = vunpack.c.h.b16 %v546
    %v1260 = vunpack.c.l.b16 %v547
    %v1261 = vunpack.c.h.b16 %v547
    %v1262 = vunpack.c.l.b16 %v548
    %v1263 = vunpack.c.h.b16 %v548
    %v1264 = vunpack.c.l.b16 %v549
    %v1265 = vunpack.c.h.b16 %v549
    %v1266 = vunpack.c.l.b16 %v550
    %v1267 = vunpack.c.h.b16 %v550
    %v1268 = vunpack.c.l.b16 %v551
    %v1269 = vunpack.c.h.b16 %v551
    %v1270 = vunpack.c.l.b16 %v552
    %v1271 = vunpack.c.h.b16 %v552
    %v1272 = vunpack.c.l.b16 %v553
    %v1273 = vunpack.c.h.b16 %v553
    %v1274 = vunpack.c.l.b16 %v554
    %v1275 = vunpack.c.h.b16 %v554
    %v1276 = vunpack.c.l.b16 %v555
    %v1277 = vunpack.c.h.b16 %v555
    %v1278 = vunpack.c.l.b16 %v556
    %v1279 = vunpack.c.h.b16 %v556
    %v1280 = vunpack.c.l.b16 %v557
    %v1281 = vunpack.c.h.b16 %v557
    %v1282 = vunpack.c.l.b16 %v558
    %v1283 = vunpack.c.h.b16 %v558
    %v1284 = vunpack.c.l.b16 %v559
    %v1285 = vunpack.c.h.b16 %v559
    %v1286 = vunpack.c.l.b16 %v560
    %v1287 = vunpack.c.h.b16 %v560
    %v1288 = vunpack.c.l.b16 %v561
    %v1289 = vunpack.c.h.b16 %v561
    %v1290 = vunpack.c.l.b16 %v562
    %v1291 = vunpack.c.h.b16 %v562
    %v1292 = vunpack.c.l.b16 %v563
    %v1293 = vunpack.c.h.b16 %v563
    %v1294 = vunpack.c.l.b16 %v564
    %v1295 = vunpack.c.h.b16 %v564
    %v1296 = vunpack.c.l.b16 %v565
    %v1297 = vunpack.c.h.b16 %v565
    %v1298 = vunpack.c.l.b16 %v566
    %v1299 = vunpack.c.h.b16 %v566
    %v1300 = vunpack.c.l.b16 %v567
    %v1301 = vunpack.c.h.b16 %v567
    %v1302 = vunpack.c.l.b16 %v568
    %v1303 = vunpack.c.h.b16 %v568
    %v1304 = vunpack.c.l.b16 %v569
    %v1305 = vunpack.c.h.b16 %v569
    %v1306 = vunpack.c.l.b16 %v570
    %v1307 = vunpack.c.h.b16 %v570
    %v1308 = vunpack.c.l.b16 %v571
    %v1309 = vunpack.c.h.b16 %v571
    %v1310 = vunpack.c.l.b16 %v572
    %v1311 = vunpack.c.h.b16 %v572
    %v1312 = vunpack.c.l.b16 %v573
    %v1313 = vunpack.c.h.b16 %v573
    %v1314 = vunpack.c.l.b16 %v574
    %v1315 = vunpack.c.h.b16 %v574
    %v1316 = vunpack.c.l.b16 %v575
    %v1317 = vunpack.c.h.b16 %v575
    %v1318 = vunpack.c.l.b16 %v576
    %v1319 = vunpack.c.h.b16 %v576
    %v1320 = vunpack.c.l.b16 %v577
    %v1321 = vunpack.c.h.b16 %v577
    %v1322 = vunpack.c.l.b16 %v578
    %v1323 = vunpack.c.h.b16 %v578
    %v1324 = vunpack.c.l.b16 %v579
    %v1325 = vunpack.c.h.b16 %v579
    %v1326 = vunpack.c.l.b16 %v580
    %v1327 = vunpack.c.h.b16 %v580
    %v1328 = vunpack.c.l.b16 %v581
    %v1329 = vunpack.c.h.b16 %v581
    %v1330 = vunpack.c.l.b16 %v582
    %v1331 = vunpack.c.h.b16 %v582
    %v1332 = vunpack.c.l.b16 %v583
    %v1333 = vunpack.c.h.b16 %v583
    %v1334 = vunpack.c.l.b16 %v584
    %v1335 = vunpack.c.h.b16 %v584
    %v1336 = vunpack.c.l.b16 %v585
    %v1337 = vunpack.c.h.b16 %v585
    %v1338 = vunpack.c.l.b16 %v586
    %v1339 = vunpack.c.h.b16 %v586
    %v1340 = vunpack.c.l.b16 %v587
    %v1341 = vunpack.c.h.b16 %v587
    %v1342 = vunpack.c.l.b16 %v588
    %v1343 = vunpack.c.h.b16 %v588
    %v1344 = vunpack.c.l.b16 %v589
    %v1345 = vunpack.c.h.b16 %v589
    %v1346 = vunpack.c.l.b16 %v590
    %v1347 = vunpack.c.h.b16 %v590
    %v1348 = vunpack.c.l.b16 %v591
    %v1349 = vunpack.c.h.b16 %v591
    %v1350 = vunpack.c.l.b16 %v592
    %v1351 = vunpack.c.h.b16 %v592
    %v1352 = vunpack.c.l.b16 %v593
    %v1353 = vunpack.c.h.b16 %v593
    %v1354 = vunpack.c.l.b16 %v594
    %v1355 = vunpack.c.h.b16 %v594
    %v1356 = vunpack.c.l.b16 %v595
    %v1357 = vunpack.c.h.b16 %v595
    %v1358 = vunpack.c.l.b16 %v596
    %v1359 = vunpack.c.h.b16 %v596
    %v1360 = vunpack.c.l.b16 %v597
    %v1361 = vunpack.c.h.b16 %v597
    %v1362 = vunpack.c.l.b16 %v598
    %v1363 = vunpack.c.h.b16 %v598
    %v1364 = vunpack.c.l.b16 %v599
    %v1365 = vunpack.c.h.b16 %v599
    %v1366 = vunpack.c.l.b16 %v600
    %v1367 = vunpack.c.h.b16 %v600
    %v1368 = vunpack.c.l.b16 %v601
    %v1369 = vunpack.c.h.b16 %v601
    %v1370 = vunpack.c.l.b16 %v602
    %v1371 = vunpack.c.h.b16 %v602
    %v1372 = vunpack.c.l.b16 %v603
    %v1373 = vunpack.c.h.b16 %v603
    %v1374 = vunpack.c.l.b16 %v604
    %v1375 = vunpack.c.h.b16 %v604
    %v1376 = vunpack.c.l.b16 %v605
    %v1377 = vunpack.c.h.b16 %v605
    %v1378 = vunpack.c.l.b16 %v606
    %v1379 = vunpack.c.h.b16 %v606
    %v1380 = vunpack.c.l.b16 %v607
    %v1381 = vunpack.c.h.b16 %v607
    %v1382 = vunpack.c.l.b16 %v608
    %v1383 = vunpack.c.h.b16 %v608
    %v1384 = vunpack.c.l.b16 %v609
    %v1385 = vunpack.c.h.b16 %v609
    %v1386 = vunpack.c.l.b16 %v610
    %v1387 = vunpack.c.h.b16 %v610
    %v1388 = vunpack.c.l.b16 %v611
    %v1389 = vunpack.c.h.b16 %v611
    %v1390 = vpack.c.b16 %v882, %v878
    %v1391 = vpack.c.b16 %v883, %v879
    %v1392 = vpack.c.b16 %v884, %v880
    %v1393 = vpack.c.b16 %v885, %v881
    %v1394 = vpack.c.b16 %v890, %v886
    %v1395 = vpack.c.b16 %v891, %v887
    %v1396 = vpack.c.b16 %v892, %v888
    %v1397 = vpack.c.b16 %v893, %v889
    %v1398 = vpack.c.b16 %v898, %v894
    %v1399 = vpack.c.b16 %v899, %v895
    %v1400 = vpack.c.b16 %v900, %v896
    %v1401 = vpack.c.b16 %v901, %v897
    %v1402 = vpack.c.b16 %v906, %v902
    %v1403 = vpack.c.b16 %v907, %v903
    %v1404 = vpack.c.b16 %v908, %v904
    %v1405 = vpack.c.b16 %v909, %v905
    %v1406 = vpack.c.b16 %v914, %v910
    %v1407 = vpack.c.b16 %v915, %v911
    %v1408 = vpack.c.b16 %v916, %v912
    %v1409 = vpack.c.b16 %v917, %v913
    %v1410 = vpack.c.b16 %v922, %v918
    %v1411 = vpack.c.b16 %v923, %v919
    %v1412 = vpack.c.b16 %v924, %v920
    %v1413 = vpack.c.b16 %v925, %v921
    %v1414 = vpack.c.b16 %v930, %v926
    %v1415 = vpack.c.b16 %v931, %v927
    %v1416 = vpack.c.b16 %v932, %v928
    %v1417 = vpack.c.b16 %v933, %v929
    %v1418 = vpack.c.b16 %v938, %v934
    %v1419 = vpack.c.b16 %v939, %v935
    %v1420 = vpack.c.b16 %v940, %v936
    %v1421 = vpack.c.b16 %v941, %v937
    %v1422 = vpack.c.b16 %v946, %v942
    %v1423 = vpack.c.b16 %v947, %v943
    %v1424 = vpack.c.b16 %v948, %v944
    %v1425 = vpack.c.b16 %v949, %v945
    %v1426 = vpack.c.b16 %v954, %v950
    %v1427 = vpack.c.b16 %v955, %v951
    %v1428 = vpack.c.b16 %v956, %v952
    %v1429 = vpack.c.b16 %v957, %v953
    %v1430 = vpack.c.b16 %v962, %v958
    %v1431 = vpack.c.b16 %v963, %v959
    %v1432 = vpack.c.b16 %v964, %v960
    %v1433 = vpack.c.b16 %v965, %v961
    %v1434 = vpack.c.b16 %v970, %v966
    %v1435 = vpack.c.b16 %v971, %v967
    %v1436 = vpack.c.b16 %v972, %v968
    %v1437 = vpack.c.b16 %v973, %v969
    %v1438 = vpack.c.b16 %v978, %v974
    %v1439 = vpack.c.b16 %v979, %v975
    %v1440 = vpack.c.b16 %v980, %v976
    %v1441 = vpack.c.b16 %v981, %v977
    %v1442 = vpack.c.b16 %v986, %v982
    %v1443 = vpack.c.b16 %v987, %v983
    %v1444 = vpack.c.b16 %v988, %v984
    %v1445 = vpack.c.b16 %v989, %v985
    %v1446 = vpack.c.b16 %v994, %v990
    %v1447 = vpack.c.b16 %v995, %v991
    %v1448 = vpack.c.b16 %v996, %v992
    %v1449 = vpack.c.b16 %v997, %v993
    %v1450 = vpack.c.b16 %v1002, %v998
    %v1451 = vpack.c.b16 %v1003, %v999
    %v1452 = vpack.c.b16 %v1004, %v1000
    %v1453 = vpack.c.b16 %v1005, %v1001
    %v1454 = vpack.c.b16 %v1010, %v1006
    %v1455 = vpack.c.b16 %v1011, %v1007
    %v1456 = vpack.c.b16 %v1012, %v1008
    %v1457 = vpack.c.b16 %v1013, %v1009
    %v1458 = vpack.c.b16 %v1018, %v1014
    %v1459 = vpack.c.b16 %v1019, %v1015
    %v1460 = vpack.c.b16 %v1020, %v1016
    %v1461 = vpack.c.b16 %v1021, %v1017
    %v1462 = vpack.c.b16 %v1026, %v1022
    %v1463 = vpack.c.b16 %v1027, %v1023
    %v1464 = vpack.c.b16 %v1028, %v1024
    %v1465 = vpack.c.b16 %v1029, %v1025
    %v1466 = vpack.c.b16 %v1034, %v1030
    %v1467 = vpack.c.b16 %v1035, %v1031
    %v1468 = vpack.c.b16 %v1036, %v1032
    %v1469 = vpack.c.b16 %v1037, %v1033
    %v1470 = vpack.c.b16 %v1042, %v1038
    %v1471 = vpack.c.b16 %v1043, %v1039
    %v1472 = vpack.c.b16 %v1044, %v1040
    %v1473 = vpack.c.b16 %v1045, %v1041
    %v1474 = vpack.c.b16 %v1050, %v1046
    %v1475 = vpack.c.b16 %v1051, %v1047
    %v1476 = vpack.c.b16 %v1052, %v1048
    %v1477 = vpack.c.b16 %v1053, %v1049
    %v1478 = vpack.c.b16 %v1058, %v1054
    %v1479 = vpack.c.b16 %v1059, %v1055
    %v1480 = vpack.c.b16 %v1060, %v1056
    %v1481 = vpack.c.b16 %v1061, %v1057
    %v1482 = vpack.c.b16 %v1066, %v1062
    %v1483 = vpack.c.b16 %v1067, %v1063
    %v1484 = vpack.c.b16 %v1068, %v1064
    %v1485 = vpack.c.b16 %v1069, %v1065
    %v1486 = vpack.c.b16 %v1074, %v1070
    %v1487 = vpack.c.b16 %v1075, %v1071
    %v1488 = vpack.c.b16 %v1076, %v1072
    %v1489 = vpack.c.b16 %v1077, %v1073
    %v1490 = vpack.c.b16 %v1082, %v1078
    %v1491 = vpack.c.b16 %v1083, %v1079
    %v1492 = vpack.c.b16 %v1084, %v1080
    %v1493 = vpack.c.b16 %v1085, %v1081
    %v1494 = vpack.c.b16 %v1090, %v1086
    %v1495 = vpack.c.b16 %v1091, %v1087
    %v1496 = vpack.c.b16 %v1092, %v1088
    %v1497 = vpack.c.b16 %v1093, %v1089
    %v1498 = vpack.c.b16 %v1098, %v1094
    %v1499 = vpack.c.b16 %v1099, %v1095
    %v1500 = vpack.c.b16 %v1100, %v1096
    %v1501 = vpack.c.b16 %v1101, %v1097
    %v1502 = vpack.c.b16 %v1106, %v1102
    %v1503 = vpack.c.b16 %v1107, %v1103
    %v1504 = vpack.c.b16 %v1108, %v1104
    %v1505 = vpack.c.b16 %v1109, %v1105
    %v1506 = vpack.c.b16 %v1114, %v1110
    %v1507 = vpack.c.b16 %v1115, %v1111
    %v1508 = vpack.c.b16 %v1116, %v1112
    %v1509 = vpack.c.b16 %v1117, %v1113
    %v1510 = vpack.c.b16 %v1122, %v1118
    %v1511 = vpack.c.b16 %v1123, %v1119
    %v1512 = vpack.c.b16 %v1124, %v1120
    %v1513 = vpack.c.b16 %v1125, %v1121
    %v1514 = vpack.c.b16 %v1130, %v1126
    %v1515 = vpack.c.b16 %v1131, %v1127
    %v1516 = vpack.c.b16 %v1132, %v1128
    %v1517 = vpack.c.b16 %v1133, %v1129
    %v1518 = vpack.c.b16 %v1138, %v1134
    %v1519 = vpack.c.b16 %v1139, %v1135
    %v1520 = vpack.c.b16 %v1140, %v1136
    %v1521 = vpack.c.b16 %v1141, %v1137
    %v1522 = vpack.c.b16 %v1146, %v1142
    %v1523 = vpack.c.b16 %v1147, %v1143
    %v1524 = vpack.c.b16 %v1148, %v1144
    %v1525 = vpack.c.b16 %v1149, %v1145
    %v1526 = vpack.c.b16 %v1154, %v1150
    %v1527 = vpack.c.b16 %v1155, %v1151
    %v1528 = vpack.c.b16 %v1156, %v1152
    %v1529 = vpack.c.b16 %v1157, %v1153
    %v1530 = vpack.c.b16 %v1162, %v1158
    %v1531 = vpack.c.b16 %v1163, %v1159
    %v1532 = vpack.c.b16 %v1164, %v1160
    %v1533 = vpack.c.b16 %v1165, %v1161
    %v1534 = vpack.c.b16 %v1170, %v1166
    %v1535 = vpack.c.b16 %v1171, %v1167
    %v1536 = vpack.c.b16 %v1172, %v1168
    %v1537 = vpack.c.b16 %v1173, %v1169
    %v1538 = vpack.c.b16 %v1178, %v1174
    %v1539 = vpack.c.b16 %v1179, %v1175
    %v1540 = vpack.c.b16 %v1180, %v1176
    %v1541 = vpack.c.b16 %v1181, %v1177
    %v1542 = vpack.c.b16 %v1186, %v1182
    %v1543 = vpack.c.b16 %v1187, %v1183
    %v1544 = vpack.c.b16 %v1188, %v1184
    %v1545 = vpack.c.b16 %v1189, %v1185
    %v1546 = vpack.c.b16 %v1194, %v1190
    %v1547 = vpack.c.b16 %v1195, %v1191
    %v1548 = vpack.c.b16 %v1196, %v1192
    %v1549 = vpack.c.b16 %v1197, %v1193
    %v1550 = vpack.c.b16 %v1202, %v1198
    %v1551 = vpack.c.b16 %v1203, %v1199
    %v1552 = vpack.c.b16 %v1204, %v1200
    %v1553 = vpack.c.b16 %v1205, %v1201
    %v1554 = vpack.c.b16 %v1210, %v1206
    %v1555 = vpack.c.b16 %v1211, %v1207
    %v1556 = vpack.c.b16 %v1212, %v1208
    %v1557 = vpack.c.b16 %v1213, %v1209
    %v1558 = vpack.c.b16 %v1218, %v1214
    %v1559 = vpack.c.b16 %v1219, %v1215
    %v1560 = vpack.c.b16 %v1220, %v1216
    %v1561 = vpack.c.b16 %v1221, %v1217
    %v1562 = vpack.c.b16 %v1226, %v1222
    %v1563 = vpack.c.b16 %v1227, %v1223
    %v1564 = vpack.c.b16 %v1228, %v1224
    %v1565 = vpack.c.b16 %v1229, %v1225
    %v1566 = vpack.c.b16 %v1234, %v1230
    %v1567 = vpack.c.b16 %v1235, %v1231
    %v1568 = vpack.c.b16 %v1236, %v1232
    %v1569 = vpack.c.b16 %v1237, %v1233
    %v1570 = vpack.c.b16 %v1242, %v1238
    %v1571 = vpack.c.b16 %v1243, %v1239
    %v1572 = vpack.c.b16 %v1244, %v1240
    %v1573 = vpack.c.b16 %v1245, %v1241
    %v1574 = vpack.c.b16 %v1250, %v1246
    %v1575 = vpack.c.b16 %v1251, %v1247
    %v1576 = vpack.c.b16 %v1252, %v1248
    %v1577 = vpack.c.b16 %v1253, %v1249
    %v1578 = vpack.c.b16 %v1258, %v1254
    %v1579 = vpack.c.b16 %v1259, %v1255
    %v1580 = vpack.c.b16 %v1260, %v1256
    %v1581 = vpack.c.b16 %v1261, %v1257
    %v1582 = vpack.c.b16 %v1266, %v1262
    %v1583 = vpack.c.b16 %v1267, %v1263
    %v1584 = vpack.c.b16 %v1268, %v1264
    %v1585 = vpack.c.b16 %v1269, %v1265
    %v1586 = vpack.c.b16 %v1274, %v1270
    %v1587 = vpack.c.b16 %v1275, %v1271
    %v1588 = vpack.c.b16 %v1276, %v1272
    %v1589 = vpack.c.b16 %v1277, %v1273
    %v1590 = vpack.c.b16 %v1282, %v1278
    %v1591 = vpack.c.b16 %v1283, %v1279
    %v1592 = vpack.c.b16 %v1284, %v1280
    %v1593 = vpack.c.b16 %v1285, %v1281
    %v1594 = vpack.c.b16 %v1290, %v1286
    %v1595 = vpack.c.b16 %v1291, %v1287
    %v1596 = vpack.c.b16 %v1292, %v1288
    %v1597 = vpack.c.b16 %v1293, %v1289
    %v1598 = vpack.c.b16 %v1298, %v1294
    %v1599 = vpack.c.b16 %v1299, %v1295
    %v1600 = vpack.c.b16 %v1300, %v1296
    %v1601 = vpack.c.b16 %v1301, %v1297
    %v1602 = vpack.c.b16 %v1306, %v1302
    %v1603 = vpack.c.b16 %v1307, %v1303
    %v1604 = vpack.c.b16 %v1308, %v1304
    %v1605 = vpack.c.b16 %v1309, %v1305
    %v1606 = vpack.c.b16 %v1314, %v1310
    %v1607 = vpack.c.b16 %v1315, %v1311
    %v1608 = vpack.c.b16 %v1316, %v1312
    %v1609 = vpack.c.b16 %v1317, %v1313
    %v1610 = vpack.c.b16 %v1322, %v1318
    %v1611 = vpack.c.b16 %v1323, %v1319
    %v1612 = vpack.c.b16 %v1324, %v1320
    %v1613 = vpack.c.b16 %v1325, %v1321
    %v1614 = vpack.c.b16 %v1330, %v1326
    %v1615 = vpack.c.b16 %v1331, %v1327
    %v1616 = vpack.c.b16 %v1332, %v1328
    %v1617 = vpack.c.b16 %v1333, %v1329
    %v1618 = vpack.c.b16 %v1338, %v1334
    %v1619 = vpack.c.b16 %v1339, %v1335
    %v1620 = vpack.c.b16 %v1340, %v1336
    %v1621 = vpack.c.b16 %v1341, %v1337
    %v1622 = vpack.c.b16 %v1346, %v1342
    %v1623 = vpack.c.b16 %v1347, %v1343
    %v1624 = vpack.c.b16 %v1348, %v1344
    %v1625 = vpack.c.b16 %v1349, %v1345
    %v1626 = vpack.c.b16 %v1354, %v1350
    %v1627 = vpack.c.b16 %v1355, %v1351
    %v1628 = vpack.c.b16 %v1356, %v1352
    %v1629 = vpack.c.b16 %v1357, %v1353
    %v1630 = vpack.c.b16 %v1362, %v1358
    %v1631 = vpack.c.b16 %v1363, %v1359
    %v1632 = vpack.c.b16 %v1364, %v1360
    %v1633 = vpack.c.b16 %v1365, %v1361
    %v1634 = vpack.c.b16 %v1370, %v1366
    %v1635 = vpack.c.b16 %v1371, %v1367
    %v1636 = vpack.c.b16 %v1372, %v1368
    %v1637 = vpack.c.b16 %v1373, %v1369
    %v1638 = vpack.c.b16 %v1378, %v1374
    %v1639 = vpack.c.b16 %v1379, %v1375
    %v1640 = vpack.c.b16 %v1380, %v1376
    %v1641 = vpack.c.b16 %v1381, %v1377
    %v1642 = vpack.c.b16 %v1386, %v1382
    %v1643 = vpack.c.b16 %v1387, %v1383
    %v1644 = vpack.c.b16 %v1388, %v1384
    %v1645 = vpack.c.b16 %v1389, %v1385
    %1902 = vmatpush.bf16.msra.mxu0 %v1418
    %1903 = vmatpush.bf16.msra.mxu0 %v1414
    %1904 = vmatpush.bf16.msra.mxu0 %v1410
    %1905 = vmatpush.bf16.msra.mxu0 %v1406
    %1906 = vmatpush.bf16.msra.mxu0 %v1402
    %1907 = vmatpush.bf16.msra.mxu0 %v1398
    %1908 = vmatpush.bf16.msra.mxu0 %v1394
    %1909 = vmatpush.bf16.msra.mxu0 %v1390
    %1910 = vmatmul.bf16.gmra.mxu0 %v348
    %v1911 = vpop.f32.mrf.mxu0
    %v1912 = vadd.f32 %v614, %v1911
    %v1913 = vpop.f32.mrf.mxu0
    %1914 = vdwg.mxu0
    %1915 = vmatpush.bf16.msra.mxu0 %v1450
    %1916 = vmatpush.bf16.msra.mxu0 %v1446
    %1917 = vmatpush.bf16.msra.mxu0 %v1442
    %1918 = vmatpush.bf16.msra.mxu0 %v1438
    %1919 = vmatpush.bf16.msra.mxu0 %v1434
    %1920 = vmatpush.bf16.msra.mxu0 %v1430
    %1921 = vmatpush.bf16.msra.mxu0 %v1426
    %1922 = vmatpush.bf16.msra.mxu0 %v1422
    %1923 = vmatmul.bf16.gmra.mxu0 %v349
    %v1924 = vpop.f32.mrf.mxu0
    %v1925 = vadd.f32 %v1912, %v1924
    %v1926 = vpop.f32.mrf.mxu0
    %1927 = vdwg.mxu0
    %1928 = vmatpush.bf16.msra.mxu0 %v1482
    %1929 = vmatpush.bf16.msra.mxu0 %v1478
    %1930 = vmatpush.bf16.msra.mxu0 %v1474
    %1931 = vmatpush.bf16.msra.mxu0 %v1470
    %1932 = vmatpush.bf16.msra.mxu0 %v1466
    %1933 = vmatpush.bf16.msra.mxu0 %v1462
    %1934 = vmatpush.bf16.msra.mxu0 %v1458
    %1935 = vmatpush.bf16.msra.mxu0 %v1454
    %1936 = vmatmul.bf16.gmra.mxu0 %v350
    %v1937 = vpop.f32.mrf.mxu0
    %v1938 = vadd.f32 %v1925, %v1937
    %v1939 = vpop.f32.mrf.mxu0
    %1940 = vdwg.mxu0
    %1941 = vmatpush.bf16.msra.mxu0 %v1514
    %1942 = vmatpush.bf16.msra.mxu0 %v1510
    %1943 = vmatpush.bf16.msra.mxu0 %v1506
    %1944 = vmatpush.bf16.msra.mxu0 %v1502
    %1945 = vmatpush.bf16.msra.mxu0 %v1498
    %1946 = vmatpush.bf16.msra.mxu0 %v1494
    %1947 = vmatpush.bf16.msra.mxu0 %v1490
    %1948 = vmatpush.bf16.msra.mxu0 %v1486
    %1949 = vmatmul.bf16.gmra.mxu0 %v351
    %v1950 = vpop.f32.mrf.mxu0
    %v1951 = vadd.f32 %v1938, %v1950
    %v1952 = vpop.f32.mrf.mxu0
    %1953 = vdwg.mxu0
    %1954 = vmatpush.bf16.msra.mxu0 %v1546
    %1955 = vmatpush.bf16.msra.mxu0 %v1542
    %1956 = vmatpush.bf16.msra.mxu0 %v1538
    %1957 = vmatpush.bf16.msra.mxu0 %v1534
    %1958 = vmatpush.bf16.msra.mxu0 %v1530
    %1959 = vmatpush.bf16.msra.mxu0 %v1526
    %1960 = vmatpush.bf16.msra.mxu0 %v1522
    %1961 = vmatpush.bf16.msra.mxu0 %v1518
    %1962 = vmatmul.bf16.gmra.mxu0 %v352
    %v1963 = vpop.f32.mrf.mxu0
    %v1964 = vadd.f32 %v1951, %v1963
    %v1965 = vpop.f32.mrf.mxu0
    %1966 = vdwg.mxu0
    %1967 = vmatpush.bf16.msra.mxu0 %v1578
    %1968 = vmatpush.bf16.msra.mxu0 %v1574
    %1969 = vmatpush.bf16.msra.mxu0 %v1570
    %1970 = vmatpush.bf16.msra.mxu0 %v1566
    %1971 = vmatpush.bf16.msra.mxu0 %v1562
    %1972 = vmatpush.bf16.msra.mxu0 %v1558
    %1973 = vmatpush.bf16.msra.mxu0 %v1554
    %1974 = vmatpush.bf16.msra.mxu0 %v1550
    %1975 = vmatmul.bf16.gmra.mxu0 %v353
    %v1976 = vpop.f32.mrf.mxu0
    %v1977 = vadd.f32 %v1964, %v1976
    %v1978 = vpop.f32.mrf.mxu0
    %1979 = vdwg.mxu0
    %1980 = vmatpush.bf16.msra.mxu0 %v1610
    %1981 = vmatpush.bf16.msra.mxu0 %v1606
    %1982 = vmatpush.bf16.msra.mxu0 %v1602
    %1983 = vmatpush.bf16.msra.mxu0 %v1598
    %1984 = vmatpush.bf16.msra.mxu0 %v1594
    %1985 = vmatpush.bf16.msra.mxu0 %v1590
    %1986 = vmatpush.bf16.msra.mxu0 %v1586
    %1987 = vmatpush.bf16.msra.mxu0 %v1582
    %1988 = vmatmul.bf16.gmra.mxu0 %v354
    %v1989 = vpop.f32.mrf.mxu0
    %v1990 = vadd.f32 %v1977, %v1989
    %v1991 = vpop.f32.mrf.mxu0
    %1992 = vdwg.mxu0
    %1993 = vmatpush.bf16.msra.mxu0 %v1642
    %1994 = vmatpush.bf16.msra.mxu0 %v1638
    %1995 = vmatpush.bf16.msra.mxu0 %v1634
    %1996 = vmatpush.bf16.msra.mxu0 %v1630
    %1997 = vmatpush.bf16.msra.mxu0 %v1626
    %1998 = vmatpush.bf16.msra.mxu0 %v1622
    %1999 = vmatpush.bf16.msra.mxu0 %v1618
    %2000 = vmatpush.bf16.msra.mxu0 %v1614
    %2001 = vmatmul.bf16.gmra.mxu0 %v355
    %v2002 = vpop.f32.mrf.mxu0
    %v2003 = vadd.f32 %v1990, %v2002
    %v2004 = vpop.f32.mrf.mxu0
    %2005 = vdwg.mxu0
    %2006 = vmatpush.bf16.msra.mxu0 %v1419
    %2007 = vmatpush.bf16.msra.mxu0 %v1415
    %2008 = vmatpush.bf16.msra.mxu0 %v1411
    %2009 = vmatpush.bf16.msra.mxu0 %v1407
    %2010 = vmatpush.bf16.msra.mxu0 %v1403
    %2011 = vmatpush.bf16.msra.mxu0 %v1399
    %2012 = vmatpush.bf16.msra.mxu0 %v1395
    %2013 = vmatpush.bf16.msra.mxu0 %v1391
    %2014 = vmatmul.bf16.gmra.mxu0 %v348
    %v2015 = vpop.f32.mrf.mxu0
    %v2016 = vadd.f32 %v615, %v2015
    %v2017 = vpop.f32.mrf.mxu0
    %2018 = vdwg.mxu0
    %2019 = vmatpush.bf16.msra.mxu0 %v1451
    %2020 = vmatpush.bf16.msra.mxu0 %v1447
    %2021 = vmatpush.bf16.msra.mxu0 %v1443
    %2022 = vmatpush.bf16.msra.mxu0 %v1439
    %2023 = vmatpush.bf16.msra.mxu0 %v1435
    %2024 = vmatpush.bf16.msra.mxu0 %v1431
    %2025 = vmatpush.bf16.msra.mxu0 %v1427
    %2026 = vmatpush.bf16.msra.mxu0 %v1423
    %2027 = vmatmul.bf16.gmra.mxu0 %v349
    %v2028 = vpop.f32.mrf.mxu0
    %v2029 = vadd.f32 %v2016, %v2028
    %v2030 = vpop.f32.mrf.mxu0
    %2031 = vdwg.mxu0
    %2032 = vmatpush.bf16.msra.mxu0 %v1483
    %2033 = vmatpush.bf16.msra.mxu0 %v1479
    %2034 = vmatpush.bf16.msra.mxu0 %v1475
    %2035 = vmatpush.bf16.msra.mxu0 %v1471
    %2036 = vmatpush.bf16.msra.mxu0 %v1467
    %2037 = vmatpush.bf16.msra.mxu0 %v1463
    %2038 = vmatpush.bf16.msra.mxu0 %v1459
    %2039 = vmatpush.bf16.msra.mxu0 %v1455
    %2040 = vmatmul.bf16.gmra.mxu0 %v350
    %v2041 = vpop.f32.mrf.mxu0
    %v2042 = vadd.f32 %v2029, %v2041
    %v2043 = vpop.f32.mrf.mxu0
    %2044 = vdwg.mxu0
    %2045 = vmatpush.bf16.msra.mxu0 %v1515
    %2046 = vmatpush.bf16.msra.mxu0 %v1511
    %2047 = vmatpush.bf16.msra.mxu0 %v1507
    %2048 = vmatpush.bf16.msra.mxu0 %v1503
    %2049 = vmatpush.bf16.msra.mxu0 %v1499
    %2050 = vmatpush.bf16.msra.mxu0 %v1495
    %2051 = vmatpush.bf16.msra.mxu0 %v1491
    %2052 = vmatpush.bf16.msra.mxu0 %v1487
    %2053 = vmatmul.bf16.gmra.mxu0 %v351
    %v2054 = vpop.f32.mrf.mxu0
    %v2055 = vadd.f32 %v2042, %v2054
    %v2056 = vpop.f32.mrf.mxu0
    %2057 = vdwg.mxu0
    %2058 = vmatpush.bf16.msra.mxu0 %v1547
    %2059 = vmatpush.bf16.msra.mxu0 %v1543
    %2060 = vmatpush.bf16.msra.mxu0 %v1539
    %2061 = vmatpush.bf16.msra.mxu0 %v1535
    %2062 = vmatpush.bf16.msra.mxu0 %v1531
    %2063 = vmatpush.bf16.msra.mxu0 %v1527
    %2064 = vmatpush.bf16.msra.mxu0 %v1523
    %2065 = vmatpush.bf16.msra.mxu0 %v1519
    %2066 = vmatmul.bf16.gmra.mxu0 %v352
    %v2067 = vpop.f32.mrf.mxu0
    %v2068 = vadd.f32 %v2055, %v2067
    %v2069 = vpop.f32.mrf.mxu0
    %2070 = vdwg.mxu0
    %2071 = vmatpush.bf16.msra.mxu0 %v1579
    %2072 = vmatpush.bf16.msra.mxu0 %v1575
    %2073 = vmatpush.bf16.msra.mxu0 %v1571
    %2074 = vmatpush.bf16.msra.mxu0 %v1567
    %2075 = vmatpush.bf16.msra.mxu0 %v1563
    %2076 = vmatpush.bf16.msra.mxu0 %v1559
    %2077 = vmatpush.bf16.msra.mxu0 %v1555
    %2078 = vmatpush.bf16.msra.mxu0 %v1551
    %2079 = vmatmul.bf16.gmra.mxu0 %v353
    %v2080 = vpop.f32.mrf.mxu0
    %v2081 = vadd.f32 %v2068, %v2080
    %v2082 = vpop.f32.mrf.mxu0
    %2083 = vdwg.mxu0
    %2084 = vmatpush.bf16.msra.mxu0 %v1611
    %2085 = vmatpush.bf16.msra.mxu0 %v1607
    %2086 = vmatpush.bf16.msra.mxu0 %v1603
    %2087 = vmatpush.bf16.msra.mxu0 %v1599
    %2088 = vmatpush.bf16.msra.mxu0 %v1595
    %2089 = vmatpush.bf16.msra.mxu0 %v1591
    %2090 = vmatpush.bf16.msra.mxu0 %v1587
    %2091 = vmatpush.bf16.msra.mxu0 %v1583
    %2092 = vmatmul.bf16.gmra.mxu0 %v354
    %v2093 = vpop.f32.mrf.mxu0
    %v2094 = vadd.f32 %v2081, %v2093
    %v2095 = vpop.f32.mrf.mxu0
    %2096 = vdwg.mxu0
    %2097 = vmatpush.bf16.msra.mxu0 %v1643
    %2098 = vmatpush.bf16.msra.mxu0 %v1639
    %2099 = vmatpush.bf16.msra.mxu0 %v1635
    %2100 = vmatpush.bf16.msra.mxu0 %v1631
    %2101 = vmatpush.bf16.msra.mxu0 %v1627
    %2102 = vmatpush.bf16.msra.mxu0 %v1623
    %2103 = vmatpush.bf16.msra.mxu0 %v1619
    %2104 = vmatpush.bf16.msra.mxu0 %v1615
    %2105 = vmatmul.bf16.gmra.mxu0 %v355
    %v2106 = vpop.f32.mrf.mxu0
    %v2107 = vadd.f32 %v2094, %v2106
    %v2108 = vpop.f32.mrf.mxu0
    %2109 = vdwg.mxu0
    %2110 = vmatpush.bf16.msra.mxu0 %v1420
    %2111 = vmatpush.bf16.msra.mxu0 %v1416
    %2112 = vmatpush.bf16.msra.mxu0 %v1412
    %2113 = vmatpush.bf16.msra.mxu0 %v1408
    %2114 = vmatpush.bf16.msra.mxu0 %v1404
    %2115 = vmatpush.bf16.msra.mxu0 %v1400
    %2116 = vmatpush.bf16.msra.mxu0 %v1396
    %2117 = vmatpush.bf16.msra.mxu0 %v1392
    %2118 = vmatmul.bf16.gmra.mxu0 %v348
    %v2119 = vpop.f32.mrf.mxu0
    %v2120 = vadd.f32 %v616, %v2119
    %v2121 = vpop.f32.mrf.mxu0
    %2122 = vdwg.mxu0
    %2123 = vmatpush.bf16.msra.mxu0 %v1452
    %2124 = vmatpush.bf16.msra.mxu0 %v1448
    %2125 = vmatpush.bf16.msra.mxu0 %v1444
    %2126 = vmatpush.bf16.msra.mxu0 %v1440
    %2127 = vmatpush.bf16.msra.mxu0 %v1436
    %2128 = vmatpush.bf16.msra.mxu0 %v1432
    %2129 = vmatpush.bf16.msra.mxu0 %v1428
    %2130 = vmatpush.bf16.msra.mxu0 %v1424
    %2131 = vmatmul.bf16.gmra.mxu0 %v349
    %v2132 = vpop.f32.mrf.mxu0
    %v2133 = vadd.f32 %v2120, %v2132
    %v2134 = vpop.f32.mrf.mxu0
    %2135 = vdwg.mxu0
    %2136 = vmatpush.bf16.msra.mxu0 %v1484
    %2137 = vmatpush.bf16.msra.mxu0 %v1480
    %2138 = vmatpush.bf16.msra.mxu0 %v1476
    %2139 = vmatpush.bf16.msra.mxu0 %v1472
    %2140 = vmatpush.bf16.msra.mxu0 %v1468
    %2141 = vmatpush.bf16.msra.mxu0 %v1464
    %2142 = vmatpush.bf16.msra.mxu0 %v1460
    %2143 = vmatpush.bf16.msra.mxu0 %v1456
    %2144 = vmatmul.bf16.gmra.mxu0 %v350
    %v2145 = vpop.f32.mrf.mxu0
    %v2146 = vadd.f32 %v2133, %v2145
    %v2147 = vpop.f32.mrf.mxu0
    %2148 = vdwg.mxu0
    %2149 = vmatpush.bf16.msra.mxu0 %v1516
    %2150 = vmatpush.bf16.msra.mxu0 %v1512
    %2151 = vmatpush.bf16.msra.mxu0 %v1508
    %2152 = vmatpush.bf16.msra.mxu0 %v1504
    %2153 = vmatpush.bf16.msra.mxu0 %v1500
    %2154 = vmatpush.bf16.msra.mxu0 %v1496
    %2155 = vmatpush.bf16.msra.mxu0 %v1492
    %2156 = vmatpush.bf16.msra.mxu0 %v1488
    %2157 = vmatmul.bf16.gmra.mxu0 %v351
    %v2158 = vpop.f32.mrf.mxu0
    %v2159 = vadd.f32 %v2146, %v2158
    %v2160 = vpop.f32.mrf.mxu0
    %2161 = vdwg.mxu0
    %2162 = vmatpush.bf16.msra.mxu0 %v1548
    %2163 = vmatpush.bf16.msra.mxu0 %v1544
    %2164 = vmatpush.bf16.msra.mxu0 %v1540
    %2165 = vmatpush.bf16.msra.mxu0 %v1536
    %2166 = vmatpush.bf16.msra.mxu0 %v1532
    %2167 = vmatpush.bf16.msra.mxu0 %v1528
    %2168 = vmatpush.bf16.msra.mxu0 %v1524
    %2169 = vmatpush.bf16.msra.mxu0 %v1520
    %2170 = vmatmul.bf16.gmra.mxu0 %v352
    %v2171 = vpop.f32.mrf.mxu0
    %v2172 = vadd.f32 %v2159, %v2171
    %v2173 = vpop.f32.mrf.mxu0
    %2174 = vdwg.mxu0
    %2175 = vmatpush.bf16.msra.mxu0 %v1580
    %2176 = vmatpush.bf16.msra.mxu0 %v1576
    %2177 = vmatpush.bf16.msra.mxu0 %v1572
    %2178 = vmatpush.bf16.msra.mxu0 %v1568
    %2179 = vmatpush.bf16.msra.mxu0 %v1564
    %2180 = vmatpush.bf16.msra.mxu0 %v1560
    %2181 = vmatpush.bf16.msra.mxu0 %v1556
    %2182 = vmatpush.bf16.msra.mxu0 %v1552
    %2183 = vmatmul.bf16.gmra.mxu0 %v353
    %v2184 = vpop.f32.mrf.mxu0
    %v2185 = vadd.f32 %v2172, %v2184
    %v2186 = vpop.f32.mrf.mxu0
    %2187 = vdwg.mxu0
    %2188 = vmatpush.bf16.msra.mxu0 %v1612
    %2189 = vmatpush.bf16.msra.mxu0 %v1608
    %2190 = vmatpush.bf16.msra.mxu0 %v1604
    %2191 = vmatpush.bf16.msra.mxu0 %v1600
    %2192 = vmatpush.bf16.msra.mxu0 %v1596
    %2193 = vmatpush.bf16.msra.mxu0 %v1592
    %2194 = vmatpush.bf16.msra.mxu0 %v1588
    %2195 = vmatpush.bf16.msra.mxu0 %v1584
    %2196 = vmatmul.bf16.gmra.mxu0 %v354
    %v2197 = vpop.f32.mrf.mxu0
    %v2198 = vadd.f32 %v2185, %v2197
    %v2199 = vpop.f32.mrf.mxu0
    %2200 = vdwg.mxu0
    %2201 = vmatpush.bf16.msra.mxu0 %v1644
    %2202 = vmatpush.bf16.msra.mxu0 %v1640
    %2203 = vmatpush.bf16.msra.mxu0 %v1636
    %2204 = vmatpush.bf16.msra.mxu0 %v1632
    %2205 = vmatpush.bf16.msra.mxu0 %v1628
    %2206 = vmatpush.bf16.msra.mxu0 %v1624
    %2207 = vmatpush.bf16.msra.mxu0 %v1620
    %2208 = vmatpush.bf16.msra.mxu0 %v1616
    %2209 = vmatmul.bf16.gmra.mxu0 %v355
    %v2210 = vpop.f32.mrf.mxu0
    %v2211 = vadd.f32 %v2198, %v2210
    %v2212 = vpop.f32.mrf.mxu0
    %2213 = vdwg.mxu0
    %2214 = vmatpush.bf16.msra.mxu0 %v1421
    %2215 = vmatpush.bf16.msra.mxu0 %v1417
    %2216 = vmatpush.bf16.msra.mxu0 %v1413
    %2217 = vmatpush.bf16.msra.mxu0 %v1409
    %2218 = vmatpush.bf16.msra.mxu0 %v1405
    %2219 = vmatpush.bf16.msra.mxu0 %v1401
    %2220 = vmatpush.bf16.msra.mxu0 %v1397
    %2221 = vmatpush.bf16.msra.mxu0 %v1393
    %2222 = vmatmul.bf16.gmra.mxu0 %v348
    %v2223 = vpop.f32.mrf.mxu0
    %v2224 = vadd.f32 %v617, %v2223
    %v2225 = vpop.f32.mrf.mxu0
    %2226 = vdwg.mxu0
    %2227 = vmatpush.bf16.msra.mxu0 %v1453
    %2228 = vmatpush.bf16.msra.mxu0 %v1449
    %2229 = vmatpush.bf16.msra.mxu0 %v1445
    %2230 = vmatpush.bf16.msra.mxu0 %v1441
    %2231 = vmatpush.bf16.msra.mxu0 %v1437
    %2232 = vmatpush.bf16.msra.mxu0 %v1433
    %2233 = vmatpush.bf16.msra.mxu0 %v1429
    %2234 = vmatpush.bf16.msra.mxu0 %v1425
    %2235 = vmatmul.bf16.gmra.mxu0 %v349
    %v2236 = vpop.f32.mrf.mxu0
    %v2237 = vadd.f32 %v2224, %v2236
    %v2238 = vpop.f32.mrf.mxu0
    %2239 = vdwg.mxu0
    %2240 = vmatpush.bf16.msra.mxu0 %v1485
    %2241 = vmatpush.bf16.msra.mxu0 %v1481
    %2242 = vmatpush.bf16.msra.mxu0 %v1477
    %2243 = vmatpush.bf16.msra.mxu0 %v1473
    %2244 = vmatpush.bf16.msra.mxu0 %v1469
    %2245 = vmatpush.bf16.msra.mxu0 %v1465
    %2246 = vmatpush.bf16.msra.mxu0 %v1461
    %2247 = vmatpush.bf16.msra.mxu0 %v1457
    %2248 = vmatmul.bf16.gmra.mxu0 %v350
    %v2249 = vpop.f32.mrf.mxu0
    %v2250 = vadd.f32 %v2237, %v2249
    %v2251 = vpop.f32.mrf.mxu0
    %2252 = vdwg.mxu0
    %2253 = vmatpush.bf16.msra.mxu0 %v1517
    %2254 = vmatpush.bf16.msra.mxu0 %v1513
    %2255 = vmatpush.bf16.msra.mxu0 %v1509
    %2256 = vmatpush.bf16.msra.mxu0 %v1505
    %2257 = vmatpush.bf16.msra.mxu0 %v1501
    %2258 = vmatpush.bf16.msra.mxu0 %v1497
    %2259 = vmatpush.bf16.msra.mxu0 %v1493
    %2260 = vmatpush.bf16.msra.mxu0 %v1489
    %2261 = vmatmul.bf16.gmra.mxu0 %v351
    %v2262 = vpop.f32.mrf.mxu0
    %v2263 = vadd.f32 %v2250, %v2262
    %v2264 = vpop.f32.mrf.mxu0
    %2265 = vdwg.mxu0
    %2266 = vmatpush.bf16.msra.mxu0 %v1549
    %2267 = vmatpush.bf16.msra.mxu0 %v1545
    %2268 = vmatpush.bf16.msra.mxu0 %v1541
    %2269 = vmatpush.bf16.msra.mxu0 %v1537
    %2270 = vmatpush.bf16.msra.mxu0 %v1533
    %2271 = vmatpush.bf16.msra.mxu0 %v1529
    %2272 = vmatpush.bf16.msra.mxu0 %v1525
    %2273 = vmatpush.bf16.msra.mxu0 %v1521
    %2274 = vmatmul.bf16.gmra.mxu0 %v352
    %v2275 = vpop.f32.mrf.mxu0
    %v2276 = vadd.f32 %v2263, %v2275
    %v2277 = vpop.f32.mrf.mxu0
    %2278 = vdwg.mxu0
    %2279 = vmatpush.bf16.msra.mxu0 %v1581
    %2280 = vmatpush.bf16.msra.mxu0 %v1577
    %2281 = vmatpush.bf16.msra.mxu0 %v1573
    %2282 = vmatpush.bf16.msra.mxu0 %v1569
    %2283 = vmatpush.bf16.msra.mxu0 %v1565
    %2284 = vmatpush.bf16.msra.mxu0 %v1561
    %2285 = vmatpush.bf16.msra.mxu0 %v1557
    %2286 = vmatpush.bf16.msra.mxu0 %v1553
    %2287 = vmatmul.bf16.gmra.mxu0 %v353
    %v2288 = vpop.f32.mrf.mxu0
    %v2289 = vadd.f32 %v2276, %v2288
    %v2290 = vpop.f32.mrf.mxu0
    %2291 = vdwg.mxu0
    %2292 = vmatpush.bf16.msra.mxu0 %v1613
    %2293 = vmatpush.bf16.msra.mxu0 %v1609
    %2294 = vmatpush.bf16.msra.mxu0 %v1605
    %2295 = vmatpush.bf16.msra.mxu0 %v1601
    %2296 = vmatpush.bf16.msra.mxu0 %v1597
    %2297 = vmatpush.bf16.msra.mxu0 %v1593
    %2298 = vmatpush.bf16.msra.mxu0 %v1589
    %2299 = vmatpush.bf16.msra.mxu0 %v1585
    %2300 = vmatmul.bf16.gmra.mxu0 %v354
    %v2301 = vpop.f32.mrf.mxu0
    %v2302 = vadd.f32 %v2289, %v2301
    %v2303 = vpop.f32.mrf.mxu0
    %2304 = vdwg.mxu0
    %2305 = vmatpush.bf16.msra.mxu0 %v1645
    %2306 = vmatpush.bf16.msra.mxu0 %v1641
    %2307 = vmatpush.bf16.msra.mxu0 %v1637
    %2308 = vmatpush.bf16.msra.mxu0 %v1633
    %2309 = vmatpush.bf16.msra.mxu0 %v1629
    %2310 = vmatpush.bf16.msra.mxu0 %v1625
    %2311 = vmatpush.bf16.msra.mxu0 %v1621
    %2312 = vmatpush.bf16.msra.mxu0 %v1617
    %2313 = vmatmul.bf16.gmra.mxu0 %v355
    %v2314 = vpop.f32.mrf.mxu0
    %v2315 = vadd.f32 %v2302, %v2314
    %v2316 = vpop.f32.mrf.mxu0
    %2317 = vdwg.mxu0
    %v2318 = vmax.f32 %v2003, 0.0
    %v2319 = vmax.f32 %v2107, 0.0
    %v2320 = vmax.f32 %v2211, 0.0
    %v2321 = vmax.f32 %v2315, 0.0
    %v2322 = vpack.c.bf16 %v2318, %v2318
    %v2323 = vpack.c.bf16 %v2319, %v2319
    %v2324 = vpack.c.bf16 %v2320, %v2320
    %v2325 = vpack.c.bf16 %v2321, %v2321
    %v2326 = vld [vmem:[#allocation11] sm:$0xf]
    %v2327 = vld [vmem:[#allocation11 + $0x4] sm:$0xf]
    %v2328 = vld [vmem:[#allocation11 + $0x8] sm:$0xf]
    %v2329 = vld [vmem:[#allocation11 + $0xc] sm:$0xf]
    %v2330 = vld [vmem:[#allocation11 + $0x10] sm:$0xf]
    %v2331 = vld [vmem:[#allocation11 + $0x14] sm:$0xf]
    %v2332 = vld [vmem:[#allocation11 + $0x18] sm:$0xf]
    %v2333 = vld [vmem:[#allocation11 + $0x1c] sm:$0xf]
    %v2334 = vld [vmem:[#allocation11 + $0x20] sm:$0xf]
    %v2335 = vld [vmem:[#allocation11 + $0x24] sm:$0xf]
    %v2336 = vld [vmem:[#allocation11 + $0x28] sm:$0xf]
    %v2337 = vld [vmem:[#allocation11 + $0x2c] sm:$0xf]
    %v2338 = vld [vmem:[#allocation11 + $0x30] sm:$0xf]
    %v2339 = vld [vmem:[#allocation11 + $0x34] sm:$0xf]
    %v2340 = vld [vmem:[#allocation11 + $0x38] sm:$0xf]
    %v2341 = vld [vmem:[#allocation11 + $0x3c] sm:$0xf]
    %v2342 = vld [vmem:[#allocation11 + $0x40] sm:$0xf]
    %v2343 = vld [vmem:[#allocation11 + $0x44] sm:$0xf]
    %v2344 = vld [vmem:[#allocation11 + $0x48] sm:$0xf]
    %v2345 = vld [vmem:[#allocation11 + $0x4c] sm:$0xf]
    %v2346 = vld [vmem:[#allocation11 + $0x50] sm:$0xf]
    %v2347 = vld [vmem:[#allocation11 + $0x54] sm:$0xf]
    %v2348 = vld [vmem:[#allocation11 + $0x58] sm:$0xf]
    %v2349 = vld [vmem:[#allocation11 + $0x5c] sm:$0xf]
    %v2350 = vld [vmem:[#allocation11 + $0x60] sm:$0xf]
    %v2351 = vld [vmem:[#allocation11 + $0x64] sm:$0xf]
    %v2352 = vld [vmem:[#allocation11 + $0x68] sm:$0xf]
    %v2353 = vld [vmem:[#allocation11 + $0x6c] sm:$0xf]
    %v2354 = vld [vmem:[#allocation11 + $0x70] sm:$0xf]
    %v2355 = vld [vmem:[#allocation11 + $0x74] sm:$0xf]
    %v2356 = vld [vmem:[#allocation11 + $0x78] sm:$0xf]
    %v2357 = vld [vmem:[#allocation11 + $0x7c] sm:$0xf]
    %v2358 = vld [vmem:[#allocation11 + $0x80] sm:$0xf]
    %v2359 = vld [vmem:[#allocation11 + $0x84] sm:$0xf]
    %v2360 = vld [vmem:[#allocation11 + $0x88] sm:$0xf]
    %v2361 = vld [vmem:[#allocation11 + $0x8c] sm:$0xf]
    %v2362 = vld [vmem:[#allocation11 + $0x90] sm:$0xf]
    %v2363 = vld [vmem:[#allocation11 + $0x94] sm:$0xf]
    %v2364 = vld [vmem:[#allocation11 + $0x98] sm:$0xf]
    %v2365 = vld [vmem:[#allocation11 + $0x9c] sm:$0xf]
    %v2366 = vld [vmem:[#allocation11 + $0xa0] sm:$0xf]
    %v2367 = vld [vmem:[#allocation11 + $0xa4] sm:$0xf]
    %v2368 = vld [vmem:[#allocation11 + $0xa8] sm:$0xf]
    %v2369 = vld [vmem:[#allocation11 + $0xac] sm:$0xf]
    %v2370 = vld [vmem:[#allocation11 + $0xb0] sm:$0xf]
    %v2371 = vld [vmem:[#allocation11 + $0xb4] sm:$0xf]
    %v2372 = vld [vmem:[#allocation11 + $0xb8] sm:$0xf]
    %v2373 = vld [vmem:[#allocation11 + $0xbc] sm:$0xf]
    %v2374 = vld [vmem:[#allocation11 + $0xc0] sm:$0xf]
    %v2375 = vld [vmem:[#allocation11 + $0xc4] sm:$0xf]
    %v2376 = vld [vmem:[#allocation11 + $0xc8] sm:$0xf]
    %v2377 = vld [vmem:[#allocation11 + $0xcc] sm:$0xf]
    %v2378 = vld [vmem:[#allocation11 + $0xd0] sm:$0xf]
    %v2379 = vld [vmem:[#allocation11 + $0xd4] sm:$0xf]
    %v2380 = vld [vmem:[#allocation11 + $0xd8] sm:$0xf]
    %v2381 = vld [vmem:[#allocation11 + $0xdc] sm:$0xf]
    %v2382 = vld [vmem:[#allocation11 + $0xe0] sm:$0xf]
    %v2383 = vld [vmem:[#allocation11 + $0xe4] sm:$0xf]
    %v2384 = vld [vmem:[#allocation11 + $0xe8] sm:$0xf]
    %v2385 = vld [vmem:[#allocation11 + $0xec] sm:$0xf]
    %v2386 = vld [vmem:[#allocation11 + $0xf0] sm:$0xf]
    %v2387 = vld [vmem:[#allocation11 + $0xf4] sm:$0xf]
    %v2388 = vld [vmem:[#allocation11 + $0xf8] sm:$0xf]
    %v2389 = vld [vmem:[#allocation11 + $0xfc] sm:$0xf]
    %v2390 = vld [vmem:[%s6] sm:$0x1]
    %v2392 = vperm.slane %v2390, 0
    %v2458 = vunpack.c.l.b16 %v2326
    %v2459 = vunpack.c.l.b16 %v2327
    %v2460 = vunpack.c.l.b16 %v2328
    %v2461 = vunpack.c.l.b16 %v2329
    %v2462 = vunpack.c.l.b16 %v2330
    %v2463 = vunpack.c.l.b16 %v2331
    %v2464 = vunpack.c.l.b16 %v2332
    %v2465 = vunpack.c.l.b16 %v2333
    %v2466 = vunpack.c.l.b16 %v2334
    %v2467 = vunpack.c.l.b16 %v2335
    %v2468 = vunpack.c.l.b16 %v2336
    %v2469 = vunpack.c.l.b16 %v2337
    %v2470 = vunpack.c.l.b16 %v2338
    %v2471 = vunpack.c.l.b16 %v2339
    %v2472 = vunpack.c.l.b16 %v2340
    %v2473 = vunpack.c.l.b16 %v2341
    %v2474 = vunpack.c.l.b16 %v2342
    %v2475 = vunpack.c.l.b16 %v2343
    %v2476 = vunpack.c.l.b16 %v2344
    %v2477 = vunpack.c.l.b16 %v2345
    %v2478 = vunpack.c.l.b16 %v2346
    %v2479 = vunpack.c.l.b16 %v2347
    %v2480 = vunpack.c.l.b16 %v2348
    %v2481 = vunpack.c.l.b16 %v2349
    %v2482 = vunpack.c.l.b16 %v2350
    %v2483 = vunpack.c.l.b16 %v2351
    %v2484 = vunpack.c.l.b16 %v2352
    %v2485 = vunpack.c.l.b16 %v2353
    %v2486 = vunpack.c.l.b16 %v2354
    %v2487 = vunpack.c.l.b16 %v2355
    %v2488 = vunpack.c.l.b16 %v2356
    %v2489 = vunpack.c.l.b16 %v2357
    %v2490 = vunpack.c.l.b16 %v2358
    %v2491 = vunpack.c.l.b16 %v2359
    %v2492 = vunpack.c.l.b16 %v2360
    %v2493 = vunpack.c.l.b16 %v2361
    %v2494 = vunpack.c.l.b16 %v2362
    %v2495 = vunpack.c.l.b16 %v2363
    %v2496 = vunpack.c.l.b16 %v2364
    %v2497 = vunpack.c.l.b16 %v2365
    %v2498 = vunpack.c.l.b16 %v2366
    %v2499 = vunpack.c.l.b16 %v2367
    %v2500 = vunpack.c.l.b16 %v2368
    %v2501 = vunpack.c.l.b16 %v2369
    %v2502 = vunpack.c.l.b16 %v2370
    %v2503 = vunpack.c.l.b16 %v2371
    %v2504 = vunpack.c.l.b16 %v2372
    %v2505 = vunpack.c.l.b16 %v2373
    %v2506 = vunpack.c.l.b16 %v2374
    %v2507 = vunpack.c.l.b16 %v2375
    %v2508 = vunpack.c.l.b16 %v2376
    %v2509 = vunpack.c.l.b16 %v2377
    %v2510 = vunpack.c.l.b16 %v2378
    %v2511 = vunpack.c.l.b16 %v2379
    %v2512 = vunpack.c.l.b16 %v2380
    %v2513 = vunpack.c.l.b16 %v2381
    %v2514 = vunpack.c.l.b16 %v2382
    %v2515 = vunpack.c.l.b16 %v2383
    %v2516 = vunpack.c.l.b16 %v2384
    %v2517 = vunpack.c.l.b16 %v2385
    %v2518 = vunpack.c.l.b16 %v2386
    %v2519 = vunpack.c.l.b16 %v2387
    %v2520 = vunpack.c.l.b16 %v2388
    %v2521 = vunpack.c.l.b16 %v2389
    %v2522 = vpack.c.b16 %v2459, %v2458
    %v2523 = vpack.c.b16 %v2461, %v2460
    %v2524 = vpack.c.b16 %v2463, %v2462
    %v2525 = vpack.c.b16 %v2465, %v2464
    %v2526 = vpack.c.b16 %v2467, %v2466
    %v2527 = vpack.c.b16 %v2469, %v2468
    %v2528 = vpack.c.b16 %v2471, %v2470
    %v2529 = vpack.c.b16 %v2473, %v2472
    %v2530 = vpack.c.b16 %v2475, %v2474
    %v2531 = vpack.c.b16 %v2477, %v2476
    %v2532 = vpack.c.b16 %v2479, %v2478
    %v2533 = vpack.c.b16 %v2481, %v2480
    %v2534 = vpack.c.b16 %v2483, %v2482
    %v2535 = vpack.c.b16 %v2485, %v2484
    %v2536 = vpack.c.b16 %v2487, %v2486
    %v2537 = vpack.c.b16 %v2489, %v2488
    %v2538 = vpack.c.b16 %v2491, %v2490
    %v2539 = vpack.c.b16 %v2493, %v2492
    %v2540 = vpack.c.b16 %v2495, %v2494
    %v2541 = vpack.c.b16 %v2497, %v2496
    %v2542 = vpack.c.b16 %v2499, %v2498
    %v2543 = vpack.c.b16 %v2501, %v2500
    %v2544 = vpack.c.b16 %v2503, %v2502
    %v2545 = vpack.c.b16 %v2505, %v2504
    %v2546 = vpack.c.b16 %v2507, %v2506
    %v2547 = vpack.c.b16 %v2509, %v2508
    %v2548 = vpack.c.b16 %v2511, %v2510
    %v2549 = vpack.c.b16 %v2513, %v2512
    %v2550 = vpack.c.b16 %v2515, %v2514
    %v2551 = vpack.c.b16 %v2517, %v2516
    %v2552 = vpack.c.b16 %v2519, %v2518
    %v2553 = vpack.c.b16 %v2521, %v2520
    %2586 = vmatpush.bf16.msra.mxu0 %v2529
    %2587 = vmatpush.bf16.msra.mxu0 %v2528
    %2588 = vmatpush.bf16.msra.mxu0 %v2527
    %2589 = vmatpush.bf16.msra.mxu0 %v2526
    %2590 = vmatpush.bf16.msra.mxu0 %v2525
    %2591 = vmatpush.bf16.msra.mxu0 %v2524
    %2592 = vmatpush.bf16.msra.mxu0 %v2523
    %2593 = vmatpush.bf16.msra.mxu0 %v2522
    %2594 = vmatmul.bf16.gmra.mxu0 %v2322
    %v2595 = vpop.f32.mrf.mxu0
    %v2596 = vadd.f32 %v2392, %v2595
    %v2597 = vpop.f32.mrf.mxu0
    %2598 = vdwg.mxu0
    %2599 = vmatpush.bf16.msra.mxu0 %v2537
    %2600 = vmatpush.bf16.msra.mxu0 %v2536
    %2601 = vmatpush.bf16.msra.mxu0 %v2535
    %2602 = vmatpush.bf16.msra.mxu0 %v2534
    %2603 = vmatpush.bf16.msra.mxu0 %v2533
    %2604 = vmatpush.bf16.msra.mxu0 %v2532
    %2605 = vmatpush.bf16.msra.mxu0 %v2531
    %2606 = vmatpush.bf16.msra.mxu0 %v2530
    %2607 = vmatmul.bf16.gmra.mxu0 %v2323
    %v2608 = vpop.f32.mrf.mxu0
    %v2609 = vadd.f32 %v2596, %v2608
    %v2610 = vpop.f32.mrf.mxu0
    %2611 = vdwg.mxu0
    %2612 = vmatpush.bf16.msra.mxu0 %v2545
    %2613 = vmatpush.bf16.msra.mxu0 %v2544
    %2614 = vmatpush.bf16.msra.mxu0 %v2543
    %2615 = vmatpush.bf16.msra.mxu0 %v2542
    %2616 = vmatpush.bf16.msra.mxu0 %v2541
    %2617 = vmatpush.bf16.msra.mxu0 %v2540
    %2618 = vmatpush.bf16.msra.mxu0 %v2539
    %2619 = vmatpush.bf16.msra.mxu0 %v2538
    %2620 = vmatmul.bf16.gmra.mxu0 %v2324
    %v2621 = vpop.f32.mrf.mxu0
    %v2622 = vadd.f32 %v2609, %v2621
    %v2623 = vpop.f32.mrf.mxu0
    %2624 = vdwg.mxu0
    %2625 = vmatpush.bf16.msra.mxu0 %v2553
    %2626 = vmatpush.bf16.msra.mxu0 %v2552
    %2627 = vmatpush.bf16.msra.mxu0 %v2551
    %2628 = vmatpush.bf16.msra.mxu0 %v2550
    %2629 = vmatpush.bf16.msra.mxu0 %v2549
    %2630 = vmatpush.bf16.msra.mxu0 %v2548
    %2631 = vmatpush.bf16.msra.mxu0 %v2547
    %2632 = vmatpush.bf16.msra.mxu0 %v2546
    %2633 = vmatmul.bf16.gmra.mxu0 %v2325
    %v2634 = vpop.f32.mrf.mxu0
    %v2635 = vadd.f32 %v2622, %v2634
    %v2636 = vpop.f32.mrf.mxu0
    %2637 = vdwg.mxu0
    %2638 = vst [vmem:[#allocation13] sm:$0xff] %v2635
    // Predicated region
    $region54: #{model_forward.1} parent=1 // pred_check
      _
    $region55: #{model_forward.1} parent=1 // pred_check_branch
      %2640 = sbr.rel (0) target = $region57
    $region56: #{model_forward.1} parent=1 // pred_region
      %2642 = vsyncadd [#allocation4], 0
      %s2644 = sshll.u32 [#allocation13], 4
      %s2645 = int_to_ptr.vmem [resolvable:$true] %s2644
      %s2646 = sshll.u32 %s7, 4
      %s2647 = int_to_ptr.hbm [resolvable:$true] %s2646
      %2649 = dma.vmem_to_hbm [thread:$0]  %s2645, 128, %s2647, [#allocation4]
    $region57: #{model_forward.1} parent=1 // pred_fallthru
      _
    // Predicated region
    $region58: #{model_forward.1} parent=1 // pred_check
      _
    $region59: #{model_forward.1} parent=1 // pred_check_branch
      %2651 = sbr.rel (0) target = $region61
    $region60: #{model_forward.1} parent=1 // pred_region
      %2653 = dma.done [#allocation4], 128
    $region61: #{model_forward.1} parent=1 // pred_fallthru
      _
    %2654 = vsyncpa [#allocation3], 1
    %2655 = vsyncpa [#allocation6], 1
    %2656 = vsyncpa [#allocation9], 1
    %2657 = vsyncpa [#allocation12], 1
    %2658 = vsyncpa [#allocation4], 1

</llo_original>
